<compile_context>
chip_gen: v7x
topology: tpu7x:2x2x1
jax: 0.10.0
libtpu: 0.0.40
codegen_flags: <defaults>
</compile_context>

<pallas_src>
import functools

import jax
import jax.numpy as jnp
from jax.experimental import pallas as pl
from jax.experimental.pallas import tpu as pltpu

BN_EPS = 1e-5


def _round_up(v, m):
    return ((v + m - 1) // m) * m


def _vmem_capacity_bytes():
    """Per-core VMEM capacity; conservative 64 MiB (v7x) fallback."""
    try:
        cap = int(pltpu.get_tpu_info().vmem_capacity_bytes)
        if cap > 0:
            return cap
    except Exception:
        pass
    return 64 << 20


# ---------------------------------------------------------------------------
# Kernel A: resident-y single-pass variant (conv matmul issued exactly once).
# Grid = (phase, m_tile); phase 0 = conv + stats, phase 1 = affine BN + ReLU.
# ---------------------------------------------------------------------------
def _cnn_block_resident_kernel(patches_ref, w_ref, gamma_ref, beta_ref, out_ref,
                               y_ref, sum_ref, sumsq_ref, scale_ref, shift_ref,
                               *, m_real):
    phase = pl.program_id(0)
    mt = pl.program_id(1)

    @pl.when(jnp.logical_and(phase == 0, mt == 0))
    def _init():
        sum_ref[...] = jnp.zeros_like(sum_ref)
        sumsq_ref[...] = jnp.zeros_like(sumsq_ref)

    @pl.when(phase == 0)
    def _conv_and_accumulate():
        # Conv tile as one MXU matmul (bf16 inputs, f32 accumulation).
        y = jnp.dot(patches_ref[...], w_ref[...],
                    preferred_element_type=jnp.float32)
        y_ref[mt] = y                                   # keep conv out resident
        sum_ref[...] += jnp.sum(y, axis=0, keepdims=True)
        sumsq_ref[...] += jnp.sum(y * y, axis=0, keepdims=True)

    @pl.when(jnp.logical_and(phase == 1, mt == 0))
    def _finalize_stats():
        inv_m = jnp.float32(1.0 / m_real)               # real rows, not padded
        mean = sum_ref[...] * inv_m
        var = jnp.maximum(sumsq_ref[...] * inv_m - mean * mean, 0.0)
        scale = jax.lax.rsqrt(var + BN_EPS) * gamma_ref[...]
        scale_ref[...] = scale
        shift_ref[...] = beta_ref[...] - mean * scale

    @pl.when(phase == 1)
    def _normalize():
        out_ref[...] = jnp.maximum(
            y_ref[mt] * scale_ref[...] + shift_ref[...], 0.0)


# ---------------------------------------------------------------------------
# Kernel B: two-phase recompute fallback (used when the full conv output does
# not fit in VMEM).  Same structure, but phase 1 re-issues the matmul.
# ---------------------------------------------------------------------------
def _cnn_block_recompute_kernel(patches_ref, w_ref, gamma_ref, beta_ref, out_ref,
                                sum_ref, sumsq_ref, scale_ref, shift_ref,
                                *, m_real):
    phase = pl.program_id(0)
    mt = pl.program_id(1)

    @pl.when(jnp.logical_and(phase == 0, mt == 0))
    def _init():
        sum_ref[...] = jnp.zeros_like(sum_ref)
        sumsq_ref[...] = jnp.zeros_like(sumsq_ref)

    y = jnp.dot(patches_ref[...], w_ref[...], preferred_element_type=jnp.float32)

    @pl.when(phase == 0)
    def _accumulate():
        sum_ref[...] += jnp.sum(y, axis=0, keepdims=True)
        sumsq_ref[...] += jnp.sum(y * y, axis=0, keepdims=True)

    @pl.when(jnp.logical_and(phase == 1, mt == 0))
    def _finalize_stats():
        inv_m = jnp.float32(1.0 / m_real)
        mean = sum_ref[...] * inv_m
        var = jnp.maximum(sumsq_ref[...] * inv_m - mean * mean, 0.0)
        scale = jax.lax.rsqrt(var + BN_EPS) * gamma_ref[...]
        scale_ref[...] = scale
        shift_ref[...] = beta_ref[...] - mean * scale

    @pl.when(phase == 1)
    def _normalize():
        out_ref[...] = jnp.maximum(y * scale_ref[...] + shift_ref[...], 0.0)


@functools.partial(jax.jit, static_argnames=("kernel_size", "stride", "padding",
                                              "force_recompute", "tile_m"))
def cnn_block_forward(x, weight, gamma, beta, *, kernel_size=3, stride=1,
                      padding=0, force_recompute=False, tile_m=None):
    """x: (N, C_in, H, W) f32.  weight: (C_out, C_in, K, K).  Returns NCHW f32."""
    n, c_in, h, w = x.shape
    c_out = weight.shape[0]
    k, s, p = kernel_size, stride, padding
    oh = (h + 2 * p - k) // s + 1
    ow = (w + 2 * p - k) // s + 1
    m = n * oh * ow
    kk = c_in * k * k

    # ---- glue: im2col in plain JAX, built directly in bf16 -----------------
    xb = x.astype(jnp.bfloat16)
    xp = jnp.pad(xb, ((0, 0), (0, 0), (p, p), (p, p)))
    cols = []
    for kh in range(k):
        for kw in range(k):
            cols.append(xp[:, :, kh:kh + s * oh:s, kw:kw + s * ow:s])  # (N,C,OH,OW)
    # (N, C, K*K, OH, OW) -> (M, C*K*K); flatten order (c_in, kh, kw) matches
    # PyTorch weight.reshape(C_out, -1).
    patches = jnp.stack(cols, axis=2).transpose(0, 3, 4, 1, 2).reshape(m, kk)
    w2d = weight.reshape(c_out, kk).astype(jnp.bfloat16).T          # (K, C_out)

    # ---- TPU-friendly padding (zeros never change results) -----------------
    if tile_m is None:
        tm = min(1024, _round_up(m, 256))      # 256-aligned M tile for the MXU
    else:
        tm = _round_up(int(tile_m), 256)
    m_pad = _round_up(m, tm)
    k_pad = _round_up(kk, 8)                   # NOT 128: keep patch stream lean
    c_pad = _round_up(c_out, 128)              # lane-dense output / BN vectors
    n_mt = m_pad // tm

    patches_p = jnp.pad(patches, ((0, m_pad - m), (0, k_pad - kk)))
    w_p = jnp.pad(w2d, ((0, k_pad - kk), (0, c_pad - c_out)))
    gamma_p = jnp.pad(gamma.astype(jnp.float32), (0, c_pad - c_out)).reshape(1, c_pad)
    beta_p = jnp.pad(beta.astype(jnp.float32), (0, c_pad - c_out)).reshape(1, c_pad)

    # ---- VMEM plan & path selection ----------------------------------------
    vmem_cap = _vmem_capacity_bytes()
    stream_bytes = (2 * tm * k_pad * 2          # double-buffered bf16 patch tiles
                    + 2 * tm * c_pad * 4        # double-buffered f32 output tiles
                    + 2 * k_pad * c_pad * 2     # weight (conservatively x2)
                    + 8 * c_pad * 4)            # gamma/beta + BN scratch vectors
    y_bytes = m_pad * c_pad * 4                 # resident conv output (f32)
    use_resident = (not force_recompute and
                    stream_bytes + y_bytes + (2 << 20) <= int(0.70 * vmem_cap))
    vmem_need = stream_bytes + (y_bytes if use_resident else 0) + (2 << 20)
    vmem_limit = int(min(int(0.85 * vmem_cap), max(8 << 20, vmem_need)))

    def bn_vec():
        return pltpu.VMEM((1, c_pad), jnp.float32)

    w_spec = pl.BlockSpec((k_pad, c_pad), lambda ph, i: (0, 0))
    vec_spec = pl.BlockSpec((1, c_pad), lambda ph, i: (0, 0))
    # phase 0 keeps the output block resident at index 0 (never written back);
    # each output tile is written to HBM exactly once, during phase 1.
    out_spec = pl.BlockSpec((tm, c_pad), lambda ph, i: (ph * i, 0))

    if use_resident:
        kernel = functools.partial(_cnn_block_resident_kernel, m_real=m)
        # Pin patches to block 0 during phase 1: they are not needed there, so
        # they are never re-streamed from HBM on this path.
        patches_spec = pl.BlockSpec((tm, k_pad), lambda ph, i: ((1 - ph) * i, 0))
        scratch = [pltpu.VMEM((n_mt, tm, c_pad), jnp.float32),   # resident y
                   bn_vec(), bn_vec(),                           # sum / sumsq
                   bn_vec(), bn_vec()]                           # scale / shift
    else:
        kernel = functools.partial(_cnn_block_recompute_kernel, m_real=m)
        patches_spec = pl.BlockSpec((tm, k_pad), lambda ph, i: (i, 0))
        scratch = [bn_vec(), bn_vec(), bn_vec(), bn_vec()]

    out_p = pl.pallas_call(
        kernel,
        out_shape=jax.ShapeDtypeStruct((m_pad, c_pad), jnp.float32),
        grid_spec=pltpu.PrefetchScalarGridSpec(
            num_scalar_prefetch=0,
            grid=(2, n_mt),                                  # (phase, m_tile)
            in_specs=[patches_spec, w_spec, vec_spec, vec_spec],
            out_specs=out_spec,
            scratch_shapes=scratch,
        ),
        compiler_params=pltpu.CompilerParams(
            # Both axes sequential: the BN scratch is a cross-tile accumulator.
            dimension_semantics=("arbitrary", "arbitrary"),
            vmem_limit_bytes=vmem_limit,
        ),
    )(patches_p, w_p, gamma_p, beta_p)

    out = out_p[:m, :c_out].reshape(n, oh, ow, c_out)
    return out.transpose(0, 3, 1, 2)   # back to NCHW to match the PyTorch module


def _reference(x, weight, gamma, beta, *, stride=1, padding=0):
    """Plain-JAX f32 reference: conv2d + train-mode BN + ReLU (NCHW)."""
    y = jax.lax.conv_general_dilated(
        x, weight, window_strides=(stride, stride),
        padding=[(padding, padding), (padding, padding)],
        dimension_numbers=("NCHW", "OIHW", "NCHW"))
    mean = jnp.mean(y, axis=(0, 2, 3), keepdims=True)
    var = jnp.mean((y - mean) ** 2, axis=(0, 2, 3), keepdims=True)
    y = (y - mean) * jax.lax.rsqrt(var + BN_EPS)
    y = y * gamma[None, :, None, None] + beta[None, :, None, None]
    return jnp.maximum(y, 0.0)


if __name__ == "__main__":
    key = jax.random.PRNGKey(0)
    k_x, k_w, k_g, k_b = jax.random.split(key, 4)

    N, C_IN, C_OUT, H, W = 2, 4, 8, 16, 16
    KSIZE = 3

    x = jax.random.normal(k_x, (N, C_IN, H, W), dtype=jnp.float32)
    fan_in = C_IN * KSIZE * KSIZE
    weight = jax.random.normal(k_w, (C_OUT, C_IN, KSIZE, KSIZE), jnp.float32)
    weight = weight * (1.0 / jnp.sqrt(fan_in))
    gamma = 1.0 + 0.1 * jax.random.normal(k_g, (C_OUT,), jnp.float32)
    beta = 0.1 * jax.random.normal(k_b, (C_OUT,), jnp.float32)

    def _check(out, ref):
        assert out.shape == ref.shape, (out.shape, ref.shape)
        max_err = float(jnp.max(jnp.abs(out - ref)))
        # bf16 conv inputs (f32 accumulation) vs. pure-f32 reference.
        assert jnp.allclose(out, ref, atol=5e-2, rtol=5e-2), max_err

    ref = _reference(x, weight, gamma, beta)

    # 1) resident-y single-pass path (default tiling, single M tile).
    out = jax.block_until_ready(
        cnn_block_forward(x, weight, gamma, beta, kernel_size=KSIZE))
    _check(out, ref)

    # 2) resident-y path with multiple M tiles (cross-tile BN statistics).
    out = jax.block_until_ready(
        cnn_block_forward(x, weight, gamma, beta, kernel_size=KSIZE, tile_m=256))
    _check(out, ref)

    # 3) two-phase recompute fallback (path taken when y does not fit in VMEM).
    out = jax.block_until_ready(
        cnn_block_forward(x, weight, gamma, beta, kernel_size=KSIZE,
                          tile_m=256, force_recompute=True))
    _check(out, ref)

    # 4) strided / padded conv through the same kernel.
    out = jax.block_until_ready(
        cnn_block_forward(x, weight, gamma, beta, kernel_size=KSIZE,
                          stride=2, padding=1))
    _check(out, _reference(x, weight, gamma, beta, stride=2, padding=1))

    print("KERNEL_OK")
</pallas_src>

<mosaic_0001>
module attributes {stable_mosaic.version = 11 : i64} {
  func.func @_cnn_block_resident_kernel(%arg0: i32, %arg1: i32, %arg2: memref<512x40xbf16, #tpu.memory_space<vmem>>, %arg3: memref<40x128xbf16, #tpu.memory_space<vmem>>, %arg4: memref<1x128xf32, #tpu.memory_space<vmem>>, %arg5: memref<1x128xf32, #tpu.memory_space<vmem>>, %arg6: memref<512x128xf32, #tpu.memory_space<vmem>>, %arg7: memref<1x512x128xf32, #tpu.memory_space<vmem>>, %arg8: memref<1x128xf32, #tpu.memory_space<vmem>>, %arg9: memref<1x128xf32, #tpu.memory_space<vmem>>, %arg10: memref<1x128xf32, #tpu.memory_space<vmem>>, %arg11: memref<1x128xf32, #tpu.memory_space<vmem>>) attributes {dimension_semantics = [#tpu.dimension_semantics<arbitrary>, #tpu.dimension_semantics<arbitrary>], iteration_bounds = array<i64: 2, 1>, scalar_prefetch = 0 : i64, scratch_operands = 5 : i64, tpu.core_type = #tpu.core_type<tc>, window_params = [{transform_indices = @transform_0, window_bounds = array<i64: 512, 40>}, {pipeline_mode = #tpu.pipeline_mode<synchronous>, transform_indices = @transform_1, window_bounds = array<i64: 40, 128>}, {pipeline_mode = #tpu.pipeline_mode<synchronous>, transform_indices = @transform_2, window_bounds = array<i64: 1, 128>}, {pipeline_mode = #tpu.pipeline_mode<synchronous>, transform_indices = @transform_3, window_bounds = array<i64: 1, 128>}, {transform_indices = @transform_4, window_bounds = array<i64: 512, 128>}]} {
    %c0_i32 = arith.constant 0 : i32
    %0 = arith.cmpi eq, %arg0, %c0_i32 : i32
    %c0_i32_0 = arith.constant 0 : i32
    %1 = arith.cmpi eq, %arg1, %c0_i32_0 : i32
    %2 = arith.andi %0, %1 : i1
    %3 = arith.extui %2 : i1 to i32
    %c0_i32_1 = arith.constant 0 : i32
    %4 = arith.cmpi ne, %3, %c0_i32_1 : i32
    scf.if %4 {
      %cst = arith.constant 0.000000e+00 : f32
      %16 = vector.broadcast %cst : f32 to vector<1x128xf32>
      %c0 = arith.constant 0 : index
      %c0_8 = arith.constant 0 : index
      %17 = vector.load %arg8[%c0, %c0_8] : memref<1x128xf32, #tpu.memory_space<vmem>>, vector<1x128xf32>
      tpu.vector_store %arg8[%c0, %c0_8], %16 {strides = array<i32>} : memref<1x128xf32, #tpu.memory_space<vmem>>, vector<1x128xf32>,
      %cst_9 = arith.constant 0.000000e+00 : f32
      %18 = vector.broadcast %cst_9 : f32 to vector<1x128xf32>
      %c0_10 = arith.constant 0 : index
      %c0_11 = arith.constant 0 : index
      %19 = vector.load %arg9[%c0_10, %c0_11] : memref<1x128xf32, #tpu.memory_space<vmem>>, vector<1x128xf32>
      tpu.vector_store %arg9[%c0_10, %c0_11], %18 {strides = array<i32>} : memref<1x128xf32, #tpu.memory_space<vmem>>, vector<1x128xf32>,
    } else {
    }
    %c0_i32_2 = arith.constant 0 : i32
    %5 = arith.cmpi eq, %arg0, %c0_i32_2 : i32
    %6 = arith.extui %5 : i1 to i32
    %c0_i32_3 = arith.constant 0 : i32
    %7 = arith.cmpi ne, %6, %c0_i32_3 : i32
    scf.if %7 {
      %c0 = arith.constant 0 : index
      %c0_8 = arith.constant 0 : index
      %16 = vector.load %arg2[%c0, %c0_8] : memref<512x40xbf16, #tpu.memory_space<vmem>>, vector<512x40xbf16>
      %c0_9 = arith.constant 0 : index
      %c0_10 = arith.constant 0 : index
      %17 = vector.load %arg3[%c0_9, %c0_10] : memref<40x128xbf16, #tpu.memory_space<vmem>>, vector<40x128xbf16>
      %cst = arith.constant dense<0.000000e+00> : vector<512x128xf32>
      %18 = tpu.matmul %16, %17, %cst {dimension_numbers = #tpu.dot_dimension_numbers<[1], [0], [0], [1], [0, 0, 1, 1], [], []>} : vector<512x40xbf16>, vector<40x128xbf16>, vector<512x128xf32> -> vector<512x128xf32>
      %19 = arith.index_cast %arg1 : i32 to index
      %c0_11 = arith.constant 0 : index
      %c0_12 = arith.constant 0 : index
      %20 = vector.load %arg7[%19, %c0_11, %c0_12] : memref<1x512x128xf32, #tpu.memory_space<vmem>>, vector<1x512x128xf32>
      %21 = vector.shape_cast %20 : vector<1x512x128xf32> to vector<512x128xf32>
      %22 = vector.shape_cast %18 : vector<512x128xf32> to vector<1x512x128xf32>
      tpu.vector_store %arg7[%19, %c0_11, %c0_12], %22 {strides = array<i32>} : memref<1x512x128xf32, #tpu.memory_space<vmem>>, vector<1x512x128xf32>,
      %c0_13 = arith.constant 0 : index
      %c0_14 = arith.constant 0 : index
      %23 = vector.load %arg8[%c0_13, %c0_14] : memref<1x128xf32, #tpu.memory_space<vmem>>, vector<1x128xf32>
      %cst_15 = arith.constant dense<0.000000e+00> : vector<128xf32>
      %24 = vector.multi_reduction <add>, %18, %cst_15 [0] : vector<512x128xf32> to vector<128xf32>
      %25 = vector.shape_cast %24 : vector<128xf32> to vector<1x128xf32>
      %26 = arith.addf %23, %25 : vector<1x128xf32>
      %c0_16 = arith.constant 0 : index
      %c0_17 = arith.constant 0 : index
      %27 = vector.load %arg8[%c0_16, %c0_17] : memref<1x128xf32, #tpu.memory_space<vmem>>, vector<1x128xf32>
      tpu.vector_store %arg8[%c0_16, %c0_17], %26 {strides = array<i32>} : memref<1x128xf32, #tpu.memory_space<vmem>>, vector<1x128xf32>,
      %c0_18 = arith.constant 0 : index
      %c0_19 = arith.constant 0 : index
      %28 = vector.load %arg9[%c0_18, %c0_19] : memref<1x128xf32, #tpu.memory_space<vmem>>, vector<1x128xf32>
      %29 = arith.mulf %18, %18 : vector<512x128xf32>
      %cst_20 = arith.constant dense<0.000000e+00> : vector<128xf32>
      %30 = vector.multi_reduction <add>, %29, %cst_20 [0] : vector<512x128xf32> to vector<128xf32>
      %31 = vector.shape_cast %30 : vector<128xf32> to vector<1x128xf32>
      %32 = arith.addf %28, %31 : vector<1x128xf32>
      %c0_21 = arith.constant 0 : index
      %c0_22 = arith.constant 0 : index
      %33 = vector.load %arg9[%c0_21, %c0_22] : memref<1x128xf32, #tpu.memory_space<vmem>>, vector<1x128xf32>
      tpu.vector_store %arg9[%c0_21, %c0_22], %32 {strides = array<i32>} : memref<1x128xf32, #tpu.memory_space<vmem>>, vector<1x128xf32>,
    } else {
    }
    %c1_i32 = arith.constant 1 : i32
    %8 = arith.cmpi eq, %arg0, %c1_i32 : i32
    %c0_i32_4 = arith.constant 0 : i32
    %9 = arith.cmpi eq, %arg1, %c0_i32_4 : i32
    %10 = arith.andi %8, %9 : i1
    %11 = arith.extui %10 : i1 to i32
    %c0_i32_5 = arith.constant 0 : i32
    %12 = arith.cmpi ne, %11, %c0_i32_5 : i32
    scf.if %12 {
      %c0 = arith.constant 0 : index
      %c0_8 = arith.constant 0 : index
      %16 = vector.load %arg8[%c0, %c0_8] : memref<1x128xf32, #tpu.memory_space<vmem>>, vector<1x128xf32>
      %cst = arith.constant 0.00255102036 : f32
      %17 = vector.broadcast %cst : f32 to vector<1x128xf32>
      %18 = arith.mulf %16, %17 : vector<1x128xf32>
      %c0_9 = arith.constant 0 : index
      %c0_10 = arith.constant 0 : index
      %19 = vector.load %arg9[%c0_9, %c0_10] : memref<1x128xf32, #tpu.memory_space<vmem>>, vector<1x128xf32>
      %cst_11 = arith.constant 0.00255102036 : f32
      %20 = vector.broadcast %cst_11 : f32 to vector<1x128xf32>
      %21 = arith.mulf %19, %20 : vector<1x128xf32>
      %22 = arith.mulf %18, %18 : vector<1x128xf32>
      %23 = arith.subf %21, %22 : vector<1x128xf32>
      %cst_12 = arith.constant 0.000000e+00 : f32
      %24 = vector.broadcast %cst_12 : f32 to vector<1x128xf32>
      %25 = arith.maximumf %23, %24 : vector<1x128xf32>
      %cst_13 = arith.constant 9.99999974E-6 : f32
      %26 = vector.broadcast %cst_13 : f32 to vector<1x128xf32>
      %27 = arith.addf %25, %26 : vector<1x128xf32>
      %28 = math.rsqrt %27 : vector<1x128xf32>
      %c0_14 = arith.constant 0 : index
      %c0_15 = arith.constant 0 : index
      %29 = vector.load %arg4[%c0_14, %c0_15] : memref<1x128xf32, #tpu.memory_space<vmem>>, vector<1x128xf32>
      %30 = arith.mulf %28, %29 : vector<1x128xf32>
      %c0_16 = arith.constant 0 : index
      %c0_17 = arith.constant 0 : index
      %31 = vector.load %arg10[%c0_16, %c0_17] : memref<1x128xf32, #tpu.memory_space<vmem>>, vector<1x128xf32>
      tpu.vector_store %arg10[%c0_16, %c0_17], %30 {strides = array<i32>} : memref<1x128xf32, #tpu.memory_space<vmem>>, vector<1x128xf32>,
      %c0_18 = arith.constant 0 : index
      %c0_19 = arith.constant 0 : index
      %32 = vector.load %arg5[%c0_18, %c0_19] : memref<1x128xf32, #tpu.memory_space<vmem>>, vector<1x128xf32>
      %33 = arith.mulf %18, %30 : vector<1x128xf32>
      %34 = arith.subf %32, %33 : vector<1x128xf32>
      %c0_20 = arith.constant 0 : index
      %c0_21 = arith.constant 0 : index
      %35 = vector.load %arg11[%c0_20, %c0_21] : memref<1x128xf32, #tpu.memory_space<vmem>>, vector<1x128xf32>
      tpu.vector_store %arg11[%c0_20, %c0_21], %34 {strides = array<i32>} : memref<1x128xf32, #tpu.memory_space<vmem>>, vector<1x128xf32>,
    } else {
    }
    %c1_i32_6 = arith.constant 1 : i32
    %13 = arith.cmpi eq, %arg0, %c1_i32_6 : i32
    %14 = arith.extui %13 : i1 to i32
    %c0_i32_7 = arith.constant 0 : i32
    %15 = arith.cmpi ne, %14, %c0_i32_7 : i32
    scf.if %15 {
      %16 = arith.index_cast %arg1 : i32 to index
      %c0 = arith.constant 0 : index
      %c0_8 = arith.constant 0 : index
      %17 = vector.load %arg7[%16, %c0, %c0_8] : memref<1x512x128xf32, #tpu.memory_space<vmem>>, vector<1x512x128xf32>
      %18 = vector.shape_cast %17 : vector<1x512x128xf32> to vector<512x128xf32>
      %c0_9 = arith.constant 0 : index
      %c0_10 = arith.constant 0 : index
      %19 = vector.load %arg10[%c0_9, %c0_10] : memref<1x128xf32, #tpu.memory_space<vmem>>, vector<1x128xf32>
      %20 = vector.broadcast %19 : vector<1x128xf32> to vector<512x128xf32>
      %21 = arith.mulf %18, %20 : vector<512x128xf32>
      %c0_11 = arith.constant 0 : index
      %c0_12 = arith.constant 0 : index
      %22 = vector.load %arg11[%c0_11, %c0_12] : memref<1x128xf32, #tpu.memory_space<vmem>>, vector<1x128xf32>
      %23 = vector.broadcast %22 : vector<1x128xf32> to vector<512x128xf32>
      %24 = arith.addf %21, %23 : vector<512x128xf32>
      %cst = arith.constant 0.000000e+00 : f32
      %25 = vector.broadcast %cst : f32 to vector<512x128xf32>
      %26 = arith.maximumf %24, %25 : vector<512x128xf32>
      %c0_13 = arith.constant 0 : index
      %c0_14 = arith.constant 0 : index
      %27 = vector.load %arg6[%c0_13, %c0_14] : memref<512x128xf32, #tpu.memory_space<vmem>>, vector<512x128xf32>
      tpu.vector_store %arg6[%c0_13, %c0_14], %26 {strides = array<i32>} : memref<512x128xf32, #tpu.memory_space<vmem>>, vector<512x128xf32>,
    } else {
    }
    return
  }
  func.func @transform_0(%arg0: i32, %arg1: i32) -> (i32, i32) {
    %c1_i32 = arith.constant 1 : i32
    %0 = arith.subi %c1_i32, %arg0 : i32
    %1 = arith.muli %0, %arg1 : i32
    %c0_i32 = arith.constant 0 : i32
    %c0_i32_0 = arith.constant 0 : i32
    return %1, %c0_i32 : i32, i32
  }
  func.func @transform_1(%arg0: i32, %arg1: i32) -> (i32, i32) {
    %c0_i32 = arith.constant 0 : i32
    %c0_i32_0 = arith.constant 0 : i32
    %c0_i32_1 = arith.constant 0 : i32
    return %c0_i32, %c0_i32_0 : i32, i32
  }
  func.func @transform_2(%arg0: i32, %arg1: i32) -> (i32, i32) {
    %c0_i32 = arith.constant 0 : i32
    %c0_i32_0 = arith.constant 0 : i32
    %c0_i32_1 = arith.constant 0 : i32
    return %c0_i32, %c0_i32_0 : i32, i32
  }
  func.func @transform_3(%arg0: i32, %arg1: i32) -> (i32, i32) {
    %c0_i32 = arith.constant 0 : i32
    %c0_i32_0 = arith.constant 0 : i32
    %c0_i32_1 = arith.constant 0 : i32
    return %c0_i32, %c0_i32_0 : i32, i32
  }
  func.func @transform_4(%arg0: i32, %arg1: i32) -> (i32, i32) {
    %0 = arith.muli %arg0, %arg1 : i32
    %c0_i32 = arith.constant 0 : i32
    %c0_i32_0 = arith.constant 0 : i32
    return %0, %c0_i32 : i32, i32
  }
}

</mosaic_0001>

<llo_original>
// kernel: cnn_block_forward.1
$region0: #{cnn_block_forward.1}
  #allocation0 [shape = 'u32[]', space=smem, size = 0x4, offset = 0x4, fixed_abs, tag = 'smem constant byte address 0x4 - core index']
  #allocation1 [shape = 'u32[144,128]{1,0:T(1,128)}', space=vmem, size = 0x12000, scoped, tag = 'internal scratch']
  #allocation2 [shape = 'f32[1,512,128]{2,1,0:T(8,128)}', space=vmem, size = 0x40000, scoped, tag = 'scratch operand']
  #allocation3 [shape = 'f32[1,128]{1,0:T(1,128)}', space=vmem, size = 0x200, scoped, tag = 'scratch operand']
  #allocation4 [shape = 'f32[1,128]{1,0:T(1,128)}', space=vmem, size = 0x200, scoped, tag = 'scratch operand']
  #allocation5 [shape = 'f32[1,128]{1,0:T(1,128)}', space=vmem, size = 0x200, scoped, tag = 'scratch operand']
  #allocation6 [shape = 'f32[1,128]{1,0:T(1,128)}', space=vmem, size = 0x200, scoped, tag = 'scratch operand']
  %s0 = inlined_call_operand.vmem [shape: bf16[512,40], index: 0, kind: input, shape index: {}]
  %s1 = inlined_call_operand.vmem [shape: bf16[40,128], index: 1, kind: input, shape index: {}]
  %s2 = inlined_call_operand.vmem [shape: f32[1,128], index: 2, kind: input, shape index: {}]
  %s3 = inlined_call_operand.vmem [shape: f32[1,128], index: 3, kind: input, shape index: {}]
  %s4 = inlined_call_operand.vmem [shape: f32[512,128], index: 4, kind: output, shape index: {}]
  %s5 = sld [smem:[#allocation0]]
  $region65: #{cnn_block_forward.1} parent=0
    _
  %s7 = ssub.s32 1, %s5
  %s8 = scalar_select 0, %s7, %s5
  loop: start=0, step=1, limit=4
  $region2: #{cnn_block_forward.1} parent=0 // loop_pre_header
    _
  $region3: #{cnn_block_forward.1} parent=0 // loop_header
    %s10 = sphi 0, %s14
    %p11 = scmp.ge.s32.totalorder %s10, 4
    %s17 = sphi 0, %s29
    %s18 = sphi 0, %s25
    %s19 = sphi 0, %s17
    %s20 = sphi 0, %s18
    %s21 = sphi 0, %s19
    %s22 = sphi 0, %s20
    %s36 = sphi 0, %s38
    %s39 = sphi 0, %s36
    %s40 = sphi 0, %s39
    %s56 = sphi 0, %s40
    %s60 = sphi 0, %s60
    %s62 = sphi 0, %s60
    %s63 = sphi 0, %s62
    %s77 = sphi 0, %s63
    %s81 = sphi 0, %s81
    %s83 = sphi 0, %s81
    %s84 = sphi 0, %s83
    %s98 = sphi 0, %s84
    %s102 = sphi 0, %s102
    %s104 = sphi 0, %s102
    %s105 = sphi 0, %s104
    %s119 = sphi 0, %s105
    %s127 = sphi 0, %s129
    %s130 = sphi 0, %s127
    %s131 = sphi 0, %s130
    %s147 = sphi 0, %s131
  $region4: #{cnn_block_forward.1} parent=0 // loop_header_branch
    %13 = sbr.rel (%p11) target = $region8
  $region5: #{cnn_block_forward.1} parent=0 // loop_body
    %s15 = ssub.s32 %s10, 1
    %s16 = ssub.s32 %s10, 2
    %s23 = sadd.s32 1, %s18
    %p24 = scmp.ge.s32.totalorder %s23, 1
    %s25 = scalar_select %p24, 0, %s23
    %s26 = sadd.s32 1, %s17
    %s27 = scalar_select %p24, %s26, %s17
    %p28 = scmp.ge.s32.totalorder %s27, 2
    %s29 = scalar_select %p28, 0, %s27
    %s30 = ssub.s32 1, %s17
    %s31 = smul.u32 %s30, %s18
    %s32 = ssub.s32 1, %s29
    %s33 = smul.u32 %s32, %s25
    %s34 = ssub.s32 %s31, %s33
    %p35 = scmp.eq.s32.totalorder %s34, 0
    %s37 = sadd.s32 %s36, 1
    %s38 = scalar_select %p35, %s36, %s37
    %p41 = pneg %p35
    %p42 = scmp.eq.s32.totalorder %s10, 1
    %p43 = por %p41, %p42
    %p44 = scmp.ne.s32.totalorder %s36, %s39
    %p45 = scmp.eq.s32.totalorder %s10, 0
    %p46 = por %p44, %p45
    %p47 = scmp.ne.s32.totalorder %s36, %s39
    %p48 = scmp.eq.s32.totalorder %s15, 1
    %p49 = por %p47, %p48
    %p50 = scmp.ne.s32.totalorder %s39, %s40
    %p51 = scmp.eq.s32.totalorder %s15, 0
    %p52 = por %p50, %p51
    %p53 = scmp.ne.s32.totalorder %s39, %s40
    %p54 = scmp.eq.s32.totalorder %s16, 1
    %p55 = por %p53, %p54
    %p57 = scmp.ne.s32.totalorder %s40, %s56
    %p58 = scmp.eq.s32.totalorder %s16, 0
    %p59 = por %p57, %p58
    %s61 = sadd.s32 %s60, 1
    %p64 = scmp.eq.s32.totalorder %s10, 1
    %p65 = scmp.ne.s32.totalorder %s60, %s62
    %p66 = scmp.eq.s32.totalorder %s10, 0
    %p67 = por %p65, %p66
    %p68 = scmp.ne.s32.totalorder %s60, %s62
    %p69 = scmp.eq.s32.totalorder %s15, 1
    %p70 = por %p68, %p69
    %p71 = scmp.ne.s32.totalorder %s62, %s63
    %p72 = scmp.eq.s32.totalorder %s15, 0
    %p73 = por %p71, %p72
    %p74 = scmp.ne.s32.totalorder %s62, %s63
    %p75 = scmp.eq.s32.totalorder %s16, 1
    %p76 = por %p74, %p75
    %p78 = scmp.ne.s32.totalorder %s63, %s77
    %p79 = scmp.eq.s32.totalorder %s16, 0
    %p80 = por %p78, %p79
    %s82 = sadd.s32 %s81, 1
    %p85 = scmp.eq.s32.totalorder %s10, 1
    %p86 = scmp.ne.s32.totalorder %s81, %s83
    %p87 = scmp.eq.s32.totalorder %s10, 0
    %p88 = por %p86, %p87
    %p89 = scmp.ne.s32.totalorder %s81, %s83
    %p90 = scmp.eq.s32.totalorder %s15, 1
    %p91 = por %p89, %p90
    %p92 = scmp.ne.s32.totalorder %s83, %s84
    %p93 = scmp.eq.s32.totalorder %s15, 0
    %p94 = por %p92, %p93
    %p95 = scmp.ne.s32.totalorder %s83, %s84
    %p96 = scmp.eq.s32.totalorder %s16, 1
    %p97 = por %p95, %p96
    %p99 = scmp.ne.s32.totalorder %s84, %s98
    %p100 = scmp.eq.s32.totalorder %s16, 0
    %p101 = por %p99, %p100
    %s103 = sadd.s32 %s102, 1
    %p106 = scmp.eq.s32.totalorder %s10, 1
    %p107 = scmp.ne.s32.totalorder %s102, %s104
    %p108 = scmp.eq.s32.totalorder %s10, 0
    %p109 = por %p107, %p108
    %p110 = scmp.ne.s32.totalorder %s102, %s104
    %p111 = scmp.eq.s32.totalorder %s15, 1
    %p112 = por %p110, %p111
    %p113 = scmp.ne.s32.totalorder %s104, %s105
    %p114 = scmp.eq.s32.totalorder %s15, 0
    %p115 = por %p113, %p114
    %p116 = scmp.ne.s32.totalorder %s104, %s105
    %p117 = scmp.eq.s32.totalorder %s16, 1
    %p118 = por %p116, %p117
    %p120 = scmp.ne.s32.totalorder %s105, %s119
    %p121 = scmp.eq.s32.totalorder %s16, 0
    %p122 = por %p120, %p121
    %s123 = smul.u32 %s17, %s18
    %s124 = smul.u32 %s29, %s25
    %s125 = ssub.s32 %s123, %s124
    %p126 = scmp.eq.s32.totalorder %s125, 0
    %s128 = sadd.s32 %s127, 1
    %s129 = scalar_select %p126, %s127, %s128
    %p132 = pneg %p126
    %p133 = scmp.eq.s32.totalorder %s10, 1
    %p134 = por %p132, %p133
    %p135 = scmp.ne.s32.totalorder %s127, %s130
    %p136 = scmp.eq.s32.totalorder %s10, 0
    %p137 = por %p135, %p136
    %p138 = scmp.ne.s32.totalorder %s127, %s130
    %p139 = scmp.eq.s32.totalorder %s15, 1
    %p140 = por %p138, %p139
    %p141 = scmp.ne.s32.totalorder %s130, %s131
    %p142 = scmp.eq.s32.totalorder %s15, 0
    %p143 = por %p141, %p142
    %p144 = scmp.ne.s32.totalorder %s130, %s131
    %p145 = scmp.eq.s32.totalorder %s16, 1
    %p146 = por %p144, %p145
    %p148 = scmp.ne.s32.totalorder %s131, %s147
    %p149 = scmp.eq.s32.totalorder %s16, 0
    %p150 = por %p148, %p149
    %p151 = scmp.le.s32.totalorder 1, %s10
    %p152 = scmp.lt.s32.totalorder %s10, 3
    %p153 = pnand %p151, %p152
    %p154 = pneg %p153
    // Predicated region
    $region9: #{cnn_block_forward.1} parent=5 // pred_check
      _
    $region10: #{cnn_block_forward.1} parent=5 // pred_check_branch
      %156 = sbr.rel (%p153) target = $region12
    $region11: #{cnn_block_forward.1} parent=5 // pred_region
      %s157 = ssub.s32 %s10, 1
      // Predicated region
      $region13: #{cnn_block_forward.1} parent=11 // pred_check
        %p158 = pneg %p73
      $region14: #{cnn_block_forward.1} parent=11 // pred_check_branch
        %160 = sbr.rel (%p158) target = $region16
      $region15: #{cnn_block_forward.1} parent=11 // pred_region
        _
      $region16: #{cnn_block_forward.1} parent=11 // pred_fallthru
        _
      // Predicated region
      $region17: #{cnn_block_forward.1} parent=11 // pred_check
        %p161 = pneg %p94
      $region18: #{cnn_block_forward.1} parent=11 // pred_check_branch
        %163 = sbr.rel (%p161) target = $region20
      $region19: #{cnn_block_forward.1} parent=11 // pred_region
        _
      $region20: #{cnn_block_forward.1} parent=11 // pred_fallthru
        _
      // Predicated region
      $region21: #{cnn_block_forward.1} parent=11 // pred_check
        %p164 = pneg %p115
      $region22: #{cnn_block_forward.1} parent=11 // pred_check_branch
        %166 = sbr.rel (%p164) target = $region24
      $region23: #{cnn_block_forward.1} parent=11 // pred_region
        _
      $region24: #{cnn_block_forward.1} parent=11 // pred_fallthru
        _
    $region12: #{cnn_block_forward.1} parent=5 // pred_fallthru
      _
    %p167 = scmp.lt.s32.totalorder %s10, 2
    // Predicated region
    $region25: #{cnn_block_forward.1} parent=5 // pred_check
      %p168 = pneg %p167
    $region26: #{cnn_block_forward.1} parent=5 // pred_check_branch
      %170 = sbr.rel (%p168) target = $region28
    $region27: #{cnn_block_forward.1} parent=5 // pred_region
      // Predicated region
      $region29: #{cnn_block_forward.1} parent=27 // pred_check
        %p171 = pneg %p46
      $region30: #{cnn_block_forward.1} parent=27 // pred_check_branch
        %173 = sbr.rel (%p171) target = $region32
      $region31: #{cnn_block_forward.1} parent=27 // pred_region
        %s174 = ssub.s32 1, %s17
        %s175 = smul.u32 %s174, %s18
        %s176 = smul.u32 64, %s175
        %p177 = scmp.lt.s32.totalorder %s176, 63
        %s178 = scalar_select %p177, %s176, 63
        %s179 = smul.addr %s178, 4
        %s180 = scalar_lea.vmem %s0, %s179
        %s181 = ssub.s32 1, %s17
        %s182 = smul.u32 %s181, %s18
        %s183 = smul.u32 64, %s182
      $region32: #{cnn_block_forward.1} parent=27 // pred_fallthru
        _
    $region28: #{cnn_block_forward.1} parent=5 // pred_fallthru
      _
    %p184 = scmp.le.s32.totalorder 1, %s10
    %p185 = scmp.lt.s32.totalorder %s10, 3
    %p186 = pnand %p184, %p185
    %p187 = pneg %p186
    // Predicated region
    $region33: #{cnn_block_forward.1} parent=5 // pred_check
      _
    $region34: #{cnn_block_forward.1} parent=5 // pred_check_branch
      %189 = sbr.rel (%p186) target = $region36
    $region35: #{cnn_block_forward.1} parent=5 // pred_region
      %s190 = ssub.s32 %s10, 1
      %s191 = ssub.s32 1, %s19
      %s192 = smul.u32 %s191, %s20
      %s193 = smul.u32 64, %s192
      %p194 = scmp.lt.s32.totalorder %s193, 63
      %s195 = scalar_select %p194, %s193, 63
      %s196 = smul.addr %s195, 4
      %s197 = scalar_lea.vmem %s0, %s196
      %p198 = pneg %p52
      %p199 = pneg %p49
      %p200 = pneg %p73
      %p201 = pneg %p70
      %p202 = pneg %p94
      %p203 = pneg %p91
      %p204 = pneg %p115
      %p205 = pneg %p112
      %p206 = pneg %p143
      %p207 = pneg %p140
      %s208 = smul.u32 %s19, %s20
      %s209 = smul.u32 64, %s208
      %p210 = scmp.lt.s32.totalorder %s209, 63
      %s211 = scalar_select %p210, %s209, 63
      %s212 = smul.addr %s211, 8
      %s213 = scalar_lea.vmem %s4, %s212
      %s214 = ssub.s32 1, %s19
      %s215 = smul.u32 %s214, %s20
      %s216 = smul.u32 64, %s215
      %p217 = scmp.lt.s32.totalorder %s216, 63
      %s218 = scalar_select %p217, %s216, 63
      %s219 = smul.addr %s218, 4
      %s220 = scalar_lea.vmem %s0, %s219
      %s221 = ssub.s32 1, %s19
      %s222 = smul.u32 %s221, %s20
      %s223 = smul.u32 64, %s222
      %s224 = smul.u32 %s19, %s20
      %s225 = smul.u32 64, %s224
      %p226 = scmp.lt.s32.totalorder %s225, 63
      %s227 = scalar_select %p226, %s225, 63
      %s228 = smul.addr %s227, 8
      %s229 = scalar_lea.vmem %s4, %s228
      %s230 = smul.u32 %s19, %s20
      %s231 = smul.u32 64, %s230
      %p233 = scmp.eq.s32.totalorder %s19, 0
      %p234 = scmp.eq.s32.totalorder %s20, 0
      %p235 = pnand %p233, %p234
      %p236 = pneg %p235
      // Predicated region
      $region37: #{cnn_block_forward.1} parent=35 // pred_check
        _
      $region38: #{cnn_block_forward.1} parent=35 // pred_check_branch
        %238 = sbr.rel (%p235) target = $region40
      $region39: #{cnn_block_forward.1} parent=35 // pred_region
        %239 = vst [vmem:[#allocation3] sm:$0x1] 0.0
        %240 = vst [vmem:[#allocation4] sm:$0x1] 0.0
      $region40: #{cnn_block_forward.1} parent=35 // pred_fallthru
        _
      // Predicated region
      $region41: #{cnn_block_forward.1} parent=35 // pred_check
        %p241 = pneg %p233
      $region42: #{cnn_block_forward.1} parent=35 // pred_check_branch
        %243 = sbr.rel (%p241) target = $region44
      $region43: #{cnn_block_forward.1} parent=35 // pred_region
        %v244 = vld [vmem:[%s220] sm:$0xf]
        %v245 = vld [vmem:[%s220 + $0x4] sm:$0xf]
        %v246 = vld [vmem:[%s220 + $0x8] sm:$0xf]
        %v247 = vld [vmem:[%s220 + $0xc] sm:$0xf]
        %v248 = vld [vmem:[%s220 + $0x10] sm:$0xf]
        %v249 = vld [vmem:[%s220 + $0x14] sm:$0xf]
        %v250 = vld [vmem:[%s220 + $0x18] sm:$0xf]
        %v251 = vld [vmem:[%s220 + $0x1c] sm:$0xf]
        %v252 = vld [vmem:[%s220 + $0x20] sm:$0xf]
        %v253 = vld [vmem:[%s220 + $0x24] sm:$0xf]
        %v254 = vld [vmem:[%s220 + $0x28] sm:$0xf]
        %v255 = vld [vmem:[%s220 + $0x2c] sm:$0xf]
        %v256 = vld [vmem:[%s220 + $0x30] sm:$0xf]
        %v257 = vld [vmem:[%s220 + $0x34] sm:$0xf]
        %v258 = vld [vmem:[%s220 + $0x38] sm:$0xf]
        %v259 = vld [vmem:[%s220 + $0x3c] sm:$0xf]
        %v260 = vld [vmem:[%s220 + $0x40] sm:$0xf]
        %v261 = vld [vmem:[%s220 + $0x44] sm:$0xf]
        %v262 = vld [vmem:[%s220 + $0x48] sm:$0xf]
        %v263 = vld [vmem:[%s220 + $0x4c] sm:$0xf]
        %v264 = vld [vmem:[%s220 + $0x50] sm:$0xf]
        %v265 = vld [vmem:[%s220 + $0x54] sm:$0xf]
        %v266 = vld [vmem:[%s220 + $0x58] sm:$0xf]
        %v267 = vld [vmem:[%s220 + $0x5c] sm:$0xf]
        %v268 = vld [vmem:[%s220 + $0x60] sm:$0xf]
        %v269 = vld [vmem:[%s220 + $0x64] sm:$0xf]
        %v270 = vld [vmem:[%s220 + $0x68] sm:$0xf]
        %v271 = vld [vmem:[%s220 + $0x6c] sm:$0xf]
        %v272 = vld [vmem:[%s220 + $0x70] sm:$0xf]
        %v273 = vld [vmem:[%s220 + $0x74] sm:$0xf]
        %v274 = vld [vmem:[%s220 + $0x78] sm:$0xf]
        %v275 = vld [vmem:[%s220 + $0x7c] sm:$0xf]
        %v276 = vld [vmem:[%s220 + $0x80] sm:$0xf]
        %v277 = vld [vmem:[%s220 + $0x84] sm:$0xf]
        %v278 = vld [vmem:[%s220 + $0x88] sm:$0xf]
        %v279 = vld [vmem:[%s220 + $0x8c] sm:$0xf]
        %v280 = vld [vmem:[%s220 + $0x90] sm:$0xf]
        %v281 = vld [vmem:[%s220 + $0x94] sm:$0xf]
        %v282 = vld [vmem:[%s220 + $0x98] sm:$0xf]
        %v283 = vld [vmem:[%s220 + $0x9c] sm:$0xf]
        %v284 = vld [vmem:[%s220 + $0xa0] sm:$0xf]
        %v285 = vld [vmem:[%s220 + $0xa4] sm:$0xf]
        %v286 = vld [vmem:[%s220 + $0xa8] sm:$0xf]
        %v287 = vld [vmem:[%s220 + $0xac] sm:$0xf]
        %v288 = vld [vmem:[%s220 + $0xb0] sm:$0xf]
        %v289 = vld [vmem:[%s220 + $0xb4] sm:$0xf]
        %v290 = vld [vmem:[%s220 + $0xb8] sm:$0xf]
        %v291 = vld [vmem:[%s220 + $0xbc] sm:$0xf]
        %v292 = vld [vmem:[%s220 + $0xc0] sm:$0xf]
        %v293 = vld [vmem:[%s220 + $0xc4] sm:$0xf]
        %v294 = vld [vmem:[%s220 + $0xc8] sm:$0xf]
        %v295 = vld [vmem:[%s220 + $0xcc] sm:$0xf]
        %v296 = vld [vmem:[%s220 + $0xd0] sm:$0xf]
        %v297 = vld [vmem:[%s220 + $0xd4] sm:$0xf]
        %v298 = vld [vmem:[%s220 + $0xd8] sm:$0xf]
        %v299 = vld [vmem:[%s220 + $0xdc] sm:$0xf]
        %v300 = vld [vmem:[%s220 + $0xe0] sm:$0xf]
        %v301 = vld [vmem:[%s220 + $0xe4] sm:$0xf]
        %v302 = vld [vmem:[%s220 + $0xe8] sm:$0xf]
        %v303 = vld [vmem:[%s220 + $0xec] sm:$0xf]
        %v304 = vld [vmem:[%s220 + $0xf0] sm:$0xf]
        %v305 = vld [vmem:[%s220 + $0xf4] sm:$0xf]
        %v306 = vld [vmem:[%s220 + $0xf8] sm:$0xf]
        %v307 = vld [vmem:[%s220 + $0xfc] sm:$0xf]
        %v308 = vld [vmem:[%s1] sm:$0xf]
        %v309 = vld [vmem:[%s1 + $0x4] sm:$0xf]
        %v310 = vld [vmem:[%s1 + $0x8] sm:$0xf]
        %v311 = vld [vmem:[%s1 + $0xc] sm:$0xf]
        %v312 = vld [vmem:[%s1 + $0x10] sm:$0xf]
        %v377 = vunpack.c.l.b16 %v244
        %v378 = vunpack.c.l.b16 %v245
        %v379 = vunpack.c.l.b16 %v246
        %v380 = vunpack.c.l.b16 %v247
        %v381 = vunpack.c.l.b16 %v248
        %v382 = vunpack.c.l.b16 %v249
        %v383 = vunpack.c.l.b16 %v250
        %v384 = vunpack.c.l.b16 %v251
        %v385 = vunpack.c.l.b16 %v252
        %v386 = vunpack.c.l.b16 %v253
        %v387 = vunpack.c.l.b16 %v254
        %v388 = vunpack.c.l.b16 %v255
        %v389 = vunpack.c.l.b16 %v256
        %v390 = vunpack.c.l.b16 %v257
        %v391 = vunpack.c.l.b16 %v258
        %v392 = vunpack.c.l.b16 %v259
        %v393 = vunpack.c.l.b16 %v260
        %v394 = vunpack.c.l.b16 %v261
        %v395 = vunpack.c.l.b16 %v262
        %v396 = vunpack.c.l.b16 %v263
        %v397 = vunpack.c.l.b16 %v264
        %v398 = vunpack.c.l.b16 %v265
        %v399 = vunpack.c.l.b16 %v266
        %v400 = vunpack.c.l.b16 %v267
        %v401 = vunpack.c.l.b16 %v268
        %v402 = vunpack.c.l.b16 %v269
        %v403 = vunpack.c.l.b16 %v270
        %v404 = vunpack.c.l.b16 %v271
        %v405 = vunpack.c.l.b16 %v272
        %v406 = vunpack.c.l.b16 %v273
        %v407 = vunpack.c.l.b16 %v274
        %v408 = vunpack.c.l.b16 %v275
        %v409 = vunpack.c.l.b16 %v276
        %v410 = vunpack.c.l.b16 %v277
        %v411 = vunpack.c.l.b16 %v278
        %v412 = vunpack.c.l.b16 %v279
        %v413 = vunpack.c.l.b16 %v280
        %v414 = vunpack.c.l.b16 %v281
        %v415 = vunpack.c.l.b16 %v282
        %v416 = vunpack.c.l.b16 %v283
        %v417 = vunpack.c.l.b16 %v284
        %v418 = vunpack.c.l.b16 %v285
        %v419 = vunpack.c.l.b16 %v286
        %v420 = vunpack.c.l.b16 %v287
        %v421 = vunpack.c.l.b16 %v288
        %v422 = vunpack.c.l.b16 %v289
        %v423 = vunpack.c.l.b16 %v290
        %v424 = vunpack.c.l.b16 %v291
        %v425 = vunpack.c.l.b16 %v292
        %v426 = vunpack.c.l.b16 %v293
        %v427 = vunpack.c.l.b16 %v294
        %v428 = vunpack.c.l.b16 %v295
        %v429 = vunpack.c.l.b16 %v296
        %v430 = vunpack.c.l.b16 %v297
        %v431 = vunpack.c.l.b16 %v298
        %v432 = vunpack.c.l.b16 %v299
        %v433 = vunpack.c.l.b16 %v300
        %v434 = vunpack.c.l.b16 %v301
        %v435 = vunpack.c.l.b16 %v302
        %v436 = vunpack.c.l.b16 %v303
        %v437 = vunpack.c.l.b16 %v304
        %v438 = vunpack.c.l.b16 %v305
        %v439 = vunpack.c.l.b16 %v306
        %v440 = vunpack.c.l.b16 %v307
        %v441 = vpack.c.b16 %v378, %v377
        %v442 = vpack.c.b16 %v380, %v379
        %v443 = vpack.c.b16 %v382, %v381
        %v444 = vpack.c.b16 %v384, %v383
        %v445 = vpack.c.b16 %v386, %v385
        %v446 = vpack.c.b16 %v388, %v387
        %v447 = vpack.c.b16 %v390, %v389
        %v448 = vpack.c.b16 %v392, %v391
        %v449 = vpack.c.b16 %v394, %v393
        %v450 = vpack.c.b16 %v396, %v395
        %v451 = vpack.c.b16 %v398, %v397
        %v452 = vpack.c.b16 %v400, %v399
        %v453 = vpack.c.b16 %v402, %v401
        %v454 = vpack.c.b16 %v404, %v403
        %v455 = vpack.c.b16 %v406, %v405
        %v456 = vpack.c.b16 %v408, %v407
        %v457 = vpack.c.b16 %v410, %v409
        %v458 = vpack.c.b16 %v412, %v411
        %v459 = vpack.c.b16 %v414, %v413
        %v460 = vpack.c.b16 %v416, %v415
        %v461 = vpack.c.b16 %v418, %v417
        %v462 = vpack.c.b16 %v420, %v419
        %v463 = vpack.c.b16 %v422, %v421
        %v464 = vpack.c.b16 %v424, %v423
        %v465 = vpack.c.b16 %v426, %v425
        %v466 = vpack.c.b16 %v428, %v427
        %v467 = vpack.c.b16 %v430, %v429
        %v468 = vpack.c.b16 %v432, %v431
        %v469 = vpack.c.b16 %v434, %v433
        %v470 = vpack.c.b16 %v436, %v435
        %v471 = vpack.c.b16 %v438, %v437
        %v472 = vpack.c.b16 %v440, %v439
        %v478 = vunpack.c.l.b16 %v308
        %v479 = vunpack.c.l.b16 %v309
        %v480 = vunpack.c.l.b16 %v310
        %v481 = vunpack.c.l.b16 %v311
        %v482 = vunpack.c.l.b16 %v312
        %v483 = vpack.c.b16 %v479, %v478
        %v484 = vpack.c.b16 %v481, %v480
        %v485 = vpack.c.b16 %v482, %v482
        %vm488 = vcmask 326656
        %v490 = vsel %vm488, %v441, 0
        %v493 = vsel %vm488, %v442, 0
        %v496 = vsel %vm488, %v443, 0
        %v499 = vsel %vm488, %v444, 0
        %v502 = vsel %vm488, %v445, 0
        %v505 = vsel %vm488, %v446, 0
        %v508 = vsel %vm488, %v447, 0
        %v511 = vsel %vm488, %v448, 0
        %v514 = vsel %vm488, %v449, 0
        %v517 = vsel %vm488, %v450, 0
        %v520 = vsel %vm488, %v451, 0
        %v523 = vsel %vm488, %v452, 0
        %v526 = vsel %vm488, %v453, 0
        %v529 = vsel %vm488, %v454, 0
        %v532 = vsel %vm488, %v455, 0
        %v535 = vsel %vm488, %v456, 0
        %v538 = vsel %vm488, %v457, 0
        %v541 = vsel %vm488, %v458, 0
        %v544 = vsel %vm488, %v459, 0
        %v547 = vsel %vm488, %v460, 0
        %v550 = vsel %vm488, %v461, 0
        %v553 = vsel %vm488, %v462, 0
        %v556 = vsel %vm488, %v463, 0
        %v559 = vsel %vm488, %v464, 0
        %v562 = vsel %vm488, %v465, 0
        %v565 = vsel %vm488, %v466, 0
        %v568 = vsel %vm488, %v467, 0
        %v571 = vsel %vm488, %v468, 0
        %v574 = vsel %vm488, %v469, 0
        %v577 = vsel %vm488, %v470, 0
        %v580 = vsel %vm488, %v471, 0
        %v583 = vsel %vm488, %v472, 0
        %vm585 = vcmask 1043456
        %v587 = vsel %vm585, %v485, 0
        %589 = vmatprep.subr.bf16.mxu0 0
        %590 = vmatpush1.bf16.msra.mxu0 %v483
        %591 = vmatprep.subr.bf16.mxu0 0
        %592 = vmatpush1.bf16.msra.mxu0 %v484
        %593 = vmatprep.subr.bf16.mxu0 0
        %594 = vmatpush1.bf16.msra.mxu0 %v587
        %595 = vmatprep.subr.bf16.mxu0 0
        %596 = vmatpush1.bf16.msra.mxu0 0
        %597 = vmatprep.subr.bf16.mxu0 0
        %598 = vmatpush1.bf16.msra.mxu0 0
        %599 = vmatprep.subr.bf16.mxu0 0
        %600 = vmatpush1.bf16.msra.mxu0 0
        %601 = vmatprep.subr.bf16.mxu0 0
        %602 = vmatpush1.bf16.msra.mxu0 0
        %603 = vmatprep.subr.bf16.mxu0 0
        %604 = vmatpush1.bf16.msra.mxu0 0
        %605 = vmatprep.subr.bf16.mxu0 0
        %606 = vmatpush1.bf16.msra.mxu0 0
        %607 = vmatprep.subr.bf16.mxu0 0
        %608 = vmatpush1.bf16.msra.mxu0 0
        %609 = vmatprep.subr.bf16.mxu0 0
        %610 = vmatpush1.bf16.msra.mxu0 0
        %611 = vmatprep.subr.bf16.mxu0 0
        %612 = vmatpush1.bf16.msra.mxu0 0
        %613 = vmatprep.subr.bf16.mxu0 0
        %614 = vmatpush1.bf16.msra.mxu0 0
        %615 = vmatprep.subr.bf16.mxu0 0
        %616 = vmatpush1.bf16.msra.mxu0 0
        %617 = vmatprep.subr.bf16.mxu0 0
        %618 = vmatpush1.bf16.msra.mxu0 0
        %619 = vmatprep.subr.bf16.mxu0 0
        %620 = vmatpush1.bf16.msra.mxu0 0
        %621 = vmatprep.mubr.bf16.mxu0 0
        %622 = vmatmul.mubr.bf16.gmra.mrb[0].mxu0 %v490
        %v623 = vpop.f32.mrb[0].mxu0
        %v624 = vadd.f32 0.0, %v623
        %v625 = vpop.f32.mrb[0].mxu0
        %v626 = vpop.f32.mrb[0].mxu0
        %v627 = vadd.f32 0.0, %v626
        %v628 = vpop.f32.mrb[0].mxu0
        %629 = vmatprep.mubr.bf16.mxu0 0
        %630 = vmatmul.mubr.bf16.gmra.mrb[0].mxu0 %v493
        %v631 = vpop.f32.mrb[0].mxu0
        %v632 = vadd.f32 0.0, %v631
        %v633 = vpop.f32.mrb[0].mxu0
        %v634 = vpop.f32.mrb[0].mxu0
        %v635 = vadd.f32 0.0, %v634
        %v636 = vpop.f32.mrb[0].mxu0
        %637 = vmatprep.mubr.bf16.mxu0 0
        %638 = vmatmul.mubr.bf16.gmra.mrb[0].mxu0 %v496
        %v639 = vpop.f32.mrb[0].mxu0
        %v640 = vadd.f32 0.0, %v639
        %v641 = vpop.f32.mrb[0].mxu0
        %v642 = vpop.f32.mrb[0].mxu0
        %v643 = vadd.f32 0.0, %v642
        %v644 = vpop.f32.mrb[0].mxu0
        %645 = vmatprep.mubr.bf16.mxu0 0
        %646 = vmatmul.mubr.bf16.gmra.mrb[0].mxu0 %v499
        %v647 = vpop.f32.mrb[0].mxu0
        %v648 = vadd.f32 0.0, %v647
        %v649 = vpop.f32.mrb[0].mxu0
        %v650 = vpop.f32.mrb[0].mxu0
        %v651 = vadd.f32 0.0, %v650
        %v652 = vpop.f32.mrb[0].mxu0
        %653 = vmatprep.mubr.bf16.mxu0 0
        %654 = vmatmul.mubr.bf16.gmra.mrb[0].mxu0 %v502
        %v655 = vpop.f32.mrb[0].mxu0
        %v656 = vadd.f32 0.0, %v655
        %v657 = vpop.f32.mrb[0].mxu0
        %v658 = vpop.f32.mrb[0].mxu0
        %v659 = vadd.f32 0.0, %v658
        %v660 = vpop.f32.mrb[0].mxu0
        %661 = vmatprep.mubr.bf16.mxu0 0
        %662 = vmatmul.mubr.bf16.gmra.mrb[0].mxu0 %v505
        %v663 = vpop.f32.mrb[0].mxu0
        %v664 = vadd.f32 0.0, %v663
        %v665 = vpop.f32.mrb[0].mxu0
        %v666 = vpop.f32.mrb[0].mxu0
        %v667 = vadd.f32 0.0, %v666
        %v668 = vpop.f32.mrb[0].mxu0
        %669 = vmatprep.mubr.bf16.mxu0 0
        %670 = vmatmul.mubr.bf16.gmra.mrb[0].mxu0 %v508
        %v671 = vpop.f32.mrb[0].mxu0
        %v672 = vadd.f32 0.0, %v671
        %v673 = vpop.f32.mrb[0].mxu0
        %v674 = vpop.f32.mrb[0].mxu0
        %v675 = vadd.f32 0.0, %v674
        %v676 = vpop.f32.mrb[0].mxu0
        %677 = vmatprep.mubr.bf16.mxu0 0
        %678 = vmatmul.mubr.bf16.gmra.mrb[0].mxu0 %v511
        %v679 = vpop.f32.mrb[0].mxu0
        %v680 = vadd.f32 0.0, %v679
        %v681 = vpop.f32.mrb[0].mxu0
        %v682 = vpop.f32.mrb[0].mxu0
        %v683 = vadd.f32 0.0, %v682
        %v684 = vpop.f32.mrb[0].mxu0
        %685 = vmatprep.mubr.bf16.mxu0 0
        %686 = vmatmul.mubr.bf16.gmra.mrb[0].mxu0 %v514
        %v687 = vpop.f32.mrb[0].mxu0
        %v688 = vadd.f32 0.0, %v687
        %v689 = vpop.f32.mrb[0].mxu0
        %v690 = vpop.f32.mrb[0].mxu0
        %v691 = vadd.f32 0.0, %v690
        %v692 = vpop.f32.mrb[0].mxu0
        %693 = vmatprep.mubr.bf16.mxu0 0
        %694 = vmatmul.mubr.bf16.gmra.mrb[0].mxu0 %v517
        %v695 = vpop.f32.mrb[0].mxu0
        %v696 = vadd.f32 0.0, %v695
        %v697 = vpop.f32.mrb[0].mxu0
        %v698 = vpop.f32.mrb[0].mxu0
        %v699 = vadd.f32 0.0, %v698
        %v700 = vpop.f32.mrb[0].mxu0
        %701 = vmatprep.mubr.bf16.mxu0 0
        %702 = vmatmul.mubr.bf16.gmra.mrb[0].mxu0 %v520
        %v703 = vpop.f32.mrb[0].mxu0
        %v704 = vadd.f32 0.0, %v703
        %v705 = vpop.f32.mrb[0].mxu0
        %v706 = vpop.f32.mrb[0].mxu0
        %v707 = vadd.f32 0.0, %v706
        %v708 = vpop.f32.mrb[0].mxu0
        %709 = vmatprep.mubr.bf16.mxu0 0
        %710 = vmatmul.mubr.bf16.gmra.mrb[0].mxu0 %v523
        %v711 = vpop.f32.mrb[0].mxu0
        %v712 = vadd.f32 0.0, %v711
        %v713 = vpop.f32.mrb[0].mxu0
        %v714 = vpop.f32.mrb[0].mxu0
        %v715 = vadd.f32 0.0, %v714
        %v716 = vpop.f32.mrb[0].mxu0
        %717 = vmatprep.mubr.bf16.mxu0 0
        %718 = vmatmul.mubr.bf16.gmra.mrb[0].mxu0 %v526
        %v719 = vpop.f32.mrb[0].mxu0
        %v720 = vadd.f32 0.0, %v719
        %v721 = vpop.f32.mrb[0].mxu0
        %v722 = vpop.f32.mrb[0].mxu0
        %v723 = vadd.f32 0.0, %v722
        %v724 = vpop.f32.mrb[0].mxu0
        %725 = vmatprep.mubr.bf16.mxu0 0
        %726 = vmatmul.mubr.bf16.gmra.mrb[0].mxu0 %v529
        %v727 = vpop.f32.mrb[0].mxu0
        %v728 = vadd.f32 0.0, %v727
        %v729 = vpop.f32.mrb[0].mxu0
        %v730 = vpop.f32.mrb[0].mxu0
        %v731 = vadd.f32 0.0, %v730
        %v732 = vpop.f32.mrb[0].mxu0
        %733 = vmatprep.mubr.bf16.mxu0 0
        %734 = vmatmul.mubr.bf16.gmra.mrb[0].mxu0 %v532
        %v735 = vpop.f32.mrb[0].mxu0
        %v736 = vadd.f32 0.0, %v735
        %v737 = vpop.f32.mrb[0].mxu0
        %v738 = vpop.f32.mrb[0].mxu0
        %v739 = vadd.f32 0.0, %v738
        %v740 = vpop.f32.mrb[0].mxu0
        %741 = vmatprep.mubr.bf16.mxu0 0
        %742 = vmatmul.mubr.bf16.gmra.mrb[0].mxu0 %v535
        %v743 = vpop.f32.mrb[0].mxu0
        %v744 = vadd.f32 0.0, %v743
        %v745 = vpop.f32.mrb[0].mxu0
        %v746 = vpop.f32.mrb[0].mxu0
        %v747 = vadd.f32 0.0, %v746
        %v748 = vpop.f32.mrb[0].mxu0
        %749 = vmatprep.mubr.bf16.mxu0 0
        %750 = vmatmul.mubr.bf16.gmra.mrb[0].mxu0 %v538
        %v751 = vpop.f32.mrb[0].mxu0
        %v752 = vadd.f32 0.0, %v751
        %v753 = vpop.f32.mrb[0].mxu0
        %v754 = vpop.f32.mrb[0].mxu0
        %v755 = vadd.f32 0.0, %v754
        %v756 = vpop.f32.mrb[0].mxu0
        %757 = vmatprep.mubr.bf16.mxu0 0
        %758 = vmatmul.mubr.bf16.gmra.mrb[0].mxu0 %v541
        %v759 = vpop.f32.mrb[0].mxu0
        %v760 = vadd.f32 0.0, %v759
        %v761 = vpop.f32.mrb[0].mxu0
        %v762 = vpop.f32.mrb[0].mxu0
        %v763 = vadd.f32 0.0, %v762
        %v764 = vpop.f32.mrb[0].mxu0
        %765 = vmatprep.mubr.bf16.mxu0 0
        %766 = vmatmul.mubr.bf16.gmra.mrb[0].mxu0 %v544
        %v767 = vpop.f32.mrb[0].mxu0
        %v768 = vadd.f32 0.0, %v767
        %v769 = vpop.f32.mrb[0].mxu0
        %v770 = vpop.f32.mrb[0].mxu0
        %v771 = vadd.f32 0.0, %v770
        %v772 = vpop.f32.mrb[0].mxu0
        %773 = vmatprep.mubr.bf16.mxu0 0
        %774 = vmatmul.mubr.bf16.gmra.mrb[0].mxu0 %v547
        %v775 = vpop.f32.mrb[0].mxu0
        %v776 = vadd.f32 0.0, %v775
        %v777 = vpop.f32.mrb[0].mxu0
        %v778 = vpop.f32.mrb[0].mxu0
        %v779 = vadd.f32 0.0, %v778
        %v780 = vpop.f32.mrb[0].mxu0
        %781 = vmatprep.mubr.bf16.mxu0 0
        %782 = vmatmul.mubr.bf16.gmra.mrb[0].mxu0 %v550
        %v783 = vpop.f32.mrb[0].mxu0
        %v784 = vadd.f32 0.0, %v783
        %v785 = vpop.f32.mrb[0].mxu0
        %v786 = vpop.f32.mrb[0].mxu0
        %v787 = vadd.f32 0.0, %v786
        %v788 = vpop.f32.mrb[0].mxu0
        %789 = vmatprep.mubr.bf16.mxu0 0
        %790 = vmatmul.mubr.bf16.gmra.mrb[0].mxu0 %v553
        %v791 = vpop.f32.mrb[0].mxu0
        %v792 = vadd.f32 0.0, %v791
        %v793 = vpop.f32.mrb[0].mxu0
        %v794 = vpop.f32.mrb[0].mxu0
        %v795 = vadd.f32 0.0, %v794
        %v796 = vpop.f32.mrb[0].mxu0
        %797 = vmatprep.mubr.bf16.mxu0 0
        %798 = vmatmul.mubr.bf16.gmra.mrb[0].mxu0 %v556
        %v799 = vpop.f32.mrb[0].mxu0
        %v800 = vadd.f32 0.0, %v799
        %v801 = vpop.f32.mrb[0].mxu0
        %v802 = vpop.f32.mrb[0].mxu0
        %v803 = vadd.f32 0.0, %v802
        %v804 = vpop.f32.mrb[0].mxu0
        %805 = vmatprep.mubr.bf16.mxu0 0
        %806 = vmatmul.mubr.bf16.gmra.mrb[0].mxu0 %v559
        %v807 = vpop.f32.mrb[0].mxu0
        %v808 = vadd.f32 0.0, %v807
        %v809 = vpop.f32.mrb[0].mxu0
        %v810 = vpop.f32.mrb[0].mxu0
        %v811 = vadd.f32 0.0, %v810
        %v812 = vpop.f32.mrb[0].mxu0
        %813 = vmatprep.mubr.bf16.mxu0 0
        %814 = vmatmul.mubr.bf16.gmra.mrb[0].mxu0 %v562
        %v815 = vpop.f32.mrb[0].mxu0
        %v816 = vadd.f32 0.0, %v815
        %v817 = vpop.f32.mrb[0].mxu0
        %v818 = vpop.f32.mrb[0].mxu0
        %v819 = vadd.f32 0.0, %v818
        %v820 = vpop.f32.mrb[0].mxu0
        %821 = vmatprep.mubr.bf16.mxu0 0
        %822 = vmatmul.mubr.bf16.gmra.mrb[0].mxu0 %v565
        %v823 = vpop.f32.mrb[0].mxu0
        %v824 = vadd.f32 0.0, %v823
        %v825 = vpop.f32.mrb[0].mxu0
        %v826 = vpop.f32.mrb[0].mxu0
        %v827 = vadd.f32 0.0, %v826
        %v828 = vpop.f32.mrb[0].mxu0
        %829 = vmatprep.mubr.bf16.mxu0 0
        %830 = vmatmul.mubr.bf16.gmra.mrb[0].mxu0 %v568
        %v831 = vpop.f32.mrb[0].mxu0
        %v832 = vadd.f32 0.0, %v831
        %v833 = vpop.f32.mrb[0].mxu0
        %v834 = vpop.f32.mrb[0].mxu0
        %v835 = vadd.f32 0.0, %v834
        %v836 = vpop.f32.mrb[0].mxu0
        %837 = vmatprep.mubr.bf16.mxu0 0
        %838 = vmatmul.mubr.bf16.gmra.mrb[0].mxu0 %v571
        %v839 = vpop.f32.mrb[0].mxu0
        %v840 = vadd.f32 0.0, %v839
        %v841 = vpop.f32.mrb[0].mxu0
        %v842 = vpop.f32.mrb[0].mxu0
        %v843 = vadd.f32 0.0, %v842
        %v844 = vpop.f32.mrb[0].mxu0
        %845 = vmatprep.mubr.bf16.mxu0 0
        %846 = vmatmul.mubr.bf16.gmra.mrb[0].mxu0 %v574
        %v847 = vpop.f32.mrb[0].mxu0
        %v848 = vadd.f32 0.0, %v847
        %v849 = vpop.f32.mrb[0].mxu0
        %v850 = vpop.f32.mrb[0].mxu0
        %v851 = vadd.f32 0.0, %v850
        %v852 = vpop.f32.mrb[0].mxu0
        %853 = vmatprep.mubr.bf16.mxu0 0
        %854 = vmatmul.mubr.bf16.gmra.mrb[0].mxu0 %v577
        %v855 = vpop.f32.mrb[0].mxu0
        %v856 = vadd.f32 0.0, %v855
        %v857 = vpop.f32.mrb[0].mxu0
        %v858 = vpop.f32.mrb[0].mxu0
        %v859 = vadd.f32 0.0, %v858
        %v860 = vpop.f32.mrb[0].mxu0
        %861 = vmatprep.mubr.bf16.mxu0 0
        %862 = vmatmul.mubr.bf16.gmra.mrb[0].mxu0 %v580
        %v863 = vpop.f32.mrb[0].mxu0
        %v864 = vadd.f32 0.0, %v863
        %v865 = vpop.f32.mrb[0].mxu0
        %v866 = vpop.f32.mrb[0].mxu0
        %v867 = vadd.f32 0.0, %v866
        %v868 = vpop.f32.mrb[0].mxu0
        %869 = vmatprep.mubr.bf16.mxu0 0
        %870 = vmatmul.mubr.bf16.gmra.mrb[0].mxu0 %v583
        %v871 = vpop.f32.mrb[0].mxu0
        %v872 = vadd.f32 0.0, %v871
        %v873 = vpop.f32.mrb[0].mxu0
        %v874 = vpop.f32.mrb[0].mxu0
        %v875 = vadd.f32 0.0, %v874
        %v876 = vpop.f32.mrb[0].mxu0
        %877 = vdwg.mxu0
        %s878 = smul.u32 %s20, 512
        %s879 = scalar_lea.vmem [#allocation2], %s878
        %880 = vst [vmem:[%s879] sm:$0xff] %v624
        %881 = vst [vmem:[%s879 + $0x8] sm:$0xff] %v627
        %882 = vst [vmem:[%s879 + $0x10] sm:$0xff] %v632
        %883 = vst [vmem:[%s879 + $0x18] sm:$0xff] %v635
        %884 = vst [vmem:[%s879 + $0x20] sm:$0xff] %v640
        %885 = vst [vmem:[%s879 + $0x28] sm:$0xff] %v643
        %886 = vst [vmem:[%s879 + $0x30] sm:$0xff] %v648
        %887 = vst [vmem:[%s879 + $0x38] sm:$0xff] %v651
        %888 = vst [vmem:[%s879 + $0x40] sm:$0xff] %v656
        %889 = vst [vmem:[%s879 + $0x48] sm:$0xff] %v659
        %890 = vst [vmem:[%s879 + $0x50] sm:$0xff] %v664
        %891 = vst [vmem:[%s879 + $0x58] sm:$0xff] %v667
        %892 = vst [vmem:[%s879 + $0x60] sm:$0xff] %v672
        %893 = vst [vmem:[%s879 + $0x68] sm:$0xff] %v675
        %894 = vst [vmem:[%s879 + $0x70] sm:$0xff] %v680
        %895 = vst [vmem:[%s879 + $0x78] sm:$0xff] %v683
        %896 = vst [vmem:[%s879 + $0x80] sm:$0xff] %v688
        %897 = vst [vmem:[%s879 + $0x88] sm:$0xff] %v691
        %898 = vst [vmem:[%s879 + $0x90] sm:$0xff] %v696
        %899 = vst [vmem:[%s879 + $0x98] sm:$0xff] %v699
        %900 = vst [vmem:[%s879 + $0xa0] sm:$0xff] %v704
        %901 = vst [vmem:[%s879 + $0xa8] sm:$0xff] %v707
        %902 = vst [vmem:[%s879 + $0xb0] sm:$0xff] %v712
        %903 = vst [vmem:[%s879 + $0xb8] sm:$0xff] %v715
        %904 = vst [vmem:[%s879 + $0xc0] sm:$0xff] %v720
        %905 = vst [vmem:[%s879 + $0xc8] sm:$0xff] %v723
        %906 = vst [vmem:[%s879 + $0xd0] sm:$0xff] %v728
        %907 = vst [vmem:[%s879 + $0xd8] sm:$0xff] %v731
        %908 = vst [vmem:[%s879 + $0xe0] sm:$0xff] %v736
        %909 = vst [vmem:[%s879 + $0xe8] sm:$0xff] %v739
        %910 = vst [vmem:[%s879 + $0xf0] sm:$0xff] %v744
        %911 = vst [vmem:[%s879 + $0xf8] sm:$0xff] %v747
        %912 = vst [vmem:[%s879 + $0x100] sm:$0xff] %v752
        %913 = vst [vmem:[%s879 + $0x108] sm:$0xff] %v755
        %914 = vst [vmem:[%s879 + $0x110] sm:$0xff] %v760
        %915 = vst [vmem:[%s879 + $0x118] sm:$0xff] %v763
        %916 = vst [vmem:[%s879 + $0x120] sm:$0xff] %v768
        %917 = vst [vmem:[%s879 + $0x128] sm:$0xff] %v771
        %918 = vst [vmem:[%s879 + $0x130] sm:$0xff] %v776
        %919 = vst [vmem:[%s879 + $0x138] sm:$0xff] %v779
        %920 = vst [vmem:[%s879 + $0x140] sm:$0xff] %v784
        %921 = vst [vmem:[%s879 + $0x148] sm:$0xff] %v787
        %922 = vst [vmem:[%s879 + $0x150] sm:$0xff] %v792
        %923 = vst [vmem:[%s879 + $0x158] sm:$0xff] %v795
        %924 = vst [vmem:[%s879 + $0x160] sm:$0xff] %v800
        %925 = vst [vmem:[%s879 + $0x168] sm:$0xff] %v803
        %926 = vst [vmem:[%s879 + $0x170] sm:$0xff] %v808
        %927 = vst [vmem:[%s879 + $0x178] sm:$0xff] %v811
        %928 = vst [vmem:[%s879 + $0x180] sm:$0xff] %v816
        %929 = vst [vmem:[%s879 + $0x188] sm:$0xff] %v819
        %930 = vst [vmem:[%s879 + $0x190] sm:$0xff] %v824
        %931 = vst [vmem:[%s879 + $0x198] sm:$0xff] %v827
        %932 = vst [vmem:[%s879 + $0x1a0] sm:$0xff] %v832
        %933 = vst [vmem:[%s879 + $0x1a8] sm:$0xff] %v835
        %934 = vst [vmem:[%s879 + $0x1b0] sm:$0xff] %v840
        %935 = vst [vmem:[%s879 + $0x1b8] sm:$0xff] %v843
        %936 = vst [vmem:[%s879 + $0x1c0] sm:$0xff] %v848
        %937 = vst [vmem:[%s879 + $0x1c8] sm:$0xff] %v851
        %938 = vst [vmem:[%s879 + $0x1d0] sm:$0xff] %v856
        %939 = vst [vmem:[%s879 + $0x1d8] sm:$0xff] %v859
        %940 = vst [vmem:[%s879 + $0x1e0] sm:$0xff] %v864
        %941 = vst [vmem:[%s879 + $0x1e8] sm:$0xff] %v867
        %942 = vst [vmem:[%s879 + $0x1f0] sm:$0xff] %v872
        %943 = vst [vmem:[%s879 + $0x1f8] sm:$0xff] %v875
        %v944 = vld [vmem:[#allocation3] sm:$0x1]
        %v945 = vadd.f32 %v624, %v627
        %v946 = vadd.f32 %v945, %v632
        %v947 = vadd.f32 %v946, %v635
        %v948 = vadd.f32 %v947, %v640
        %v949 = vadd.f32 %v948, %v643
        %v950 = vadd.f32 %v949, %v648
        %v951 = vadd.f32 %v950, %v651
        %v952 = vadd.f32 %v951, %v656
        %v953 = vadd.f32 %v952, %v659
        %v954 = vadd.f32 %v953, %v664
        %v955 = vadd.f32 %v954, %v667
        %v956 = vadd.f32 %v955, %v672
        %v957 = vadd.f32 %v956, %v675
        %v958 = vadd.f32 %v957, %v680
        %v959 = vadd.f32 %v958, %v683
        %v960 = vadd.f32 %v959, %v688
        %v961 = vadd.f32 %v960, %v691
        %v962 = vadd.f32 %v961, %v696
        %v963 = vadd.f32 %v962, %v699
        %v964 = vadd.f32 %v963, %v704
        %v965 = vadd.f32 %v964, %v707
        %v966 = vadd.f32 %v965, %v712
        %v967 = vadd.f32 %v966, %v715
        %v968 = vadd.f32 %v967, %v720
        %v969 = vadd.f32 %v968, %v723
        %v970 = vadd.f32 %v969, %v728
        %v971 = vadd.f32 %v970, %v731
        %v972 = vadd.f32 %v971, %v736
        %v973 = vadd.f32 %v972, %v739
        %v974 = vadd.f32 %v973, %v744
        %v975 = vadd.f32 %v974, %v747
        %v976 = vadd.f32 %v975, %v752
        %v977 = vadd.f32 %v976, %v755
        %v978 = vadd.f32 %v977, %v760
        %v979 = vadd.f32 %v978, %v763
        %v980 = vadd.f32 %v979, %v768
        %v981 = vadd.f32 %v980, %v771
        %v982 = vadd.f32 %v981, %v776
        %v983 = vadd.f32 %v982, %v779
        %v984 = vadd.f32 %v983, %v784
        %v985 = vadd.f32 %v984, %v787
        %v986 = vadd.f32 %v985, %v792
        %v987 = vadd.f32 %v986, %v795
        %v988 = vadd.f32 %v987, %v800
        %v989 = vadd.f32 %v988, %v803
        %v990 = vadd.f32 %v989, %v808
        %v991 = vadd.f32 %v990, %v811
        %v992 = vadd.f32 %v991, %v816
        %v993 = vadd.f32 %v992, %v819
        %v994 = vadd.f32 %v993, %v824
        %v995 = vadd.f32 %v994, %v827
        %v996 = vadd.f32 %v995, %v832
        %v997 = vadd.f32 %v996, %v835
        %v998 = vadd.f32 %v997, %v840
        %v999 = vadd.f32 %v998, %v843
        %v1000 = vadd.f32 %v999, %v848
        %v1001 = vadd.f32 %v1000, %v851
        %v1002 = vadd.f32 %v1001, %v856
        %v1003 = vadd.f32 %v1002, %v859
        %v1004 = vadd.f32 %v1003, %v864
        %v1005 = vadd.f32 %v1004, %v867
        %v1006 = vadd.f32 %v1005, %v872
        %v1007 = vadd.f32 %v1006, %v875
        %v1008 = vrot.slane %v1007, 4
        %v1009 = vadd.f32 %v1007, %v1008
        %v1010 = vrot.slane %v1009, 2
        %v1011 = vadd.f32 %v1009, %v1010
        %v1012 = vrot.slane %v1011, 1
        %v1013 = vadd.f32 %v1011, %v1012
        %v1014 = vadd.f32 %v944, %v1013
        %1015 = vst [vmem:[#allocation3] sm:$0x1] %v1014
        %v1016 = vld [vmem:[#allocation4] sm:$0x1]
        %v1017 = vmul.f32 %v624, %v624
        %v1018 = vmul.f32 %v627, %v627
        %v1019 = vmul.f32 %v632, %v632
        %v1020 = vmul.f32 %v635, %v635
        %v1021 = vmul.f32 %v640, %v640
        %v1022 = vmul.f32 %v643, %v643
        %v1023 = vmul.f32 %v648, %v648
        %v1024 = vmul.f32 %v651, %v651
        %v1025 = vmul.f32 %v656, %v656
        %v1026 = vmul.f32 %v659, %v659
        %v1027 = vmul.f32 %v664, %v664
        %v1028 = vmul.f32 %v667, %v667
        %v1029 = vmul.f32 %v672, %v672
        %v1030 = vmul.f32 %v675, %v675
        %v1031 = vmul.f32 %v680, %v680
        %v1032 = vmul.f32 %v683, %v683
        %v1033 = vmul.f32 %v688, %v688
        %v1034 = vmul.f32 %v691, %v691
        %v1035 = vmul.f32 %v696, %v696
        %v1036 = vmul.f32 %v699, %v699
        %v1037 = vmul.f32 %v704, %v704
        %v1038 = vmul.f32 %v707, %v707
        %v1039 = vmul.f32 %v712, %v712
        %v1040 = vmul.f32 %v715, %v715
        %v1041 = vmul.f32 %v720, %v720
        %v1042 = vmul.f32 %v723, %v723
        %v1043 = vmul.f32 %v728, %v728
        %v1044 = vmul.f32 %v731, %v731
        %v1045 = vmul.f32 %v736, %v736
        %v1046 = vmul.f32 %v739, %v739
        %v1047 = vmul.f32 %v744, %v744
        %v1048 = vmul.f32 %v747, %v747
        %v1049 = vmul.f32 %v752, %v752
        %v1050 = vmul.f32 %v755, %v755
        %v1051 = vmul.f32 %v760, %v760
        %v1052 = vmul.f32 %v763, %v763
        %v1053 = vmul.f32 %v768, %v768
        %v1054 = vmul.f32 %v771, %v771
        %v1055 = vmul.f32 %v776, %v776
        %v1056 = vmul.f32 %v779, %v779
        %v1057 = vmul.f32 %v784, %v784
        %v1058 = vmul.f32 %v787, %v787
        %v1059 = vmul.f32 %v792, %v792
        %v1060 = vmul.f32 %v795, %v795
        %v1061 = vmul.f32 %v800, %v800
        %v1062 = vmul.f32 %v803, %v803
        %v1063 = vmul.f32 %v808, %v808
        %v1064 = vmul.f32 %v811, %v811
        %v1065 = vmul.f32 %v816, %v816
        %v1066 = vmul.f32 %v819, %v819
        %v1067 = vmul.f32 %v824, %v824
        %v1068 = vmul.f32 %v827, %v827
        %v1069 = vmul.f32 %v832, %v832
        %v1070 = vmul.f32 %v835, %v835
        %v1071 = vmul.f32 %v840, %v840
        %v1072 = vmul.f32 %v843, %v843
        %v1073 = vmul.f32 %v848, %v848
        %v1074 = vmul.f32 %v851, %v851
        %v1075 = vmul.f32 %v856, %v856
        %v1076 = vmul.f32 %v859, %v859
        %v1077 = vmul.f32 %v864, %v864
        %v1078 = vmul.f32 %v867, %v867
        %v1079 = vmul.f32 %v872, %v872
        %v1080 = vmul.f32 %v875, %v875
        %v1081 = vadd.f32 %v1017, %v1018
        %v1082 = vadd.f32 %v1081, %v1019
        %v1083 = vadd.f32 %v1082, %v1020
        %v1084 = vadd.f32 %v1083, %v1021
        %v1085 = vadd.f32 %v1084, %v1022
        %v1086 = vadd.f32 %v1085, %v1023
        %v1087 = vadd.f32 %v1086, %v1024
        %v1088 = vadd.f32 %v1087, %v1025
        %v1089 = vadd.f32 %v1088, %v1026
        %v1090 = vadd.f32 %v1089, %v1027
        %v1091 = vadd.f32 %v1090, %v1028
        %v1092 = vadd.f32 %v1091, %v1029
        %v1093 = vadd.f32 %v1092, %v1030
        %v1094 = vadd.f32 %v1093, %v1031
        %v1095 = vadd.f32 %v1094, %v1032
        %v1096 = vadd.f32 %v1095, %v1033
        %v1097 = vadd.f32 %v1096, %v1034
        %v1098 = vadd.f32 %v1097, %v1035
        %v1099 = vadd.f32 %v1098, %v1036
        %v1100 = vadd.f32 %v1099, %v1037
        %v1101 = vadd.f32 %v1100, %v1038
        %v1102 = vadd.f32 %v1101, %v1039
        %v1103 = vadd.f32 %v1102, %v1040
        %v1104 = vadd.f32 %v1103, %v1041
        %v1105 = vadd.f32 %v1104, %v1042
        %v1106 = vadd.f32 %v1105, %v1043
        %v1107 = vadd.f32 %v1106, %v1044
        %v1108 = vadd.f32 %v1107, %v1045
        %v1109 = vadd.f32 %v1108, %v1046
        %v1110 = vadd.f32 %v1109, %v1047
        %v1111 = vadd.f32 %v1110, %v1048
        %v1112 = vadd.f32 %v1111, %v1049
        %v1113 = vadd.f32 %v1112, %v1050
        %v1114 = vadd.f32 %v1113, %v1051
        %v1115 = vadd.f32 %v1114, %v1052
        %v1116 = vadd.f32 %v1115, %v1053
        %v1117 = vadd.f32 %v1116, %v1054
        %v1118 = vadd.f32 %v1117, %v1055
        %v1119 = vadd.f32 %v1118, %v1056
        %v1120 = vadd.f32 %v1119, %v1057
        %v1121 = vadd.f32 %v1120, %v1058
        %v1122 = vadd.f32 %v1121, %v1059
        %v1123 = vadd.f32 %v1122, %v1060
        %v1124 = vadd.f32 %v1123, %v1061
        %v1125 = vadd.f32 %v1124, %v1062
        %v1126 = vadd.f32 %v1125, %v1063
        %v1127 = vadd.f32 %v1126, %v1064
        %v1128 = vadd.f32 %v1127, %v1065
        %v1129 = vadd.f32 %v1128, %v1066
        %v1130 = vadd.f32 %v1129, %v1067
        %v1131 = vadd.f32 %v1130, %v1068
        %v1132 = vadd.f32 %v1131, %v1069
        %v1133 = vadd.f32 %v1132, %v1070
        %v1134 = vadd.f32 %v1133, %v1071
        %v1135 = vadd.f32 %v1134, %v1072
        %v1136 = vadd.f32 %v1135, %v1073
        %v1137 = vadd.f32 %v1136, %v1074
        %v1138 = vadd.f32 %v1137, %v1075
        %v1139 = vadd.f32 %v1138, %v1076
        %v1140 = vadd.f32 %v1139, %v1077
        %v1141 = vadd.f32 %v1140, %v1078
        %v1142 = vadd.f32 %v1141, %v1079
        %v1143 = vadd.f32 %v1142, %v1080
        %v1144 = vrot.slane %v1143, 4
        %v1145 = vadd.f32 %v1143, %v1144
        %v1146 = vrot.slane %v1145, 2
        %v1147 = vadd.f32 %v1145, %v1146
        %v1148 = vrot.slane %v1147, 1
        %v1149 = vadd.f32 %v1147, %v1148
        %v1150 = vadd.f32 %v1016, %v1149
        %1151 = vst [vmem:[#allocation4] sm:$0x1] %v1150
      $region44: #{cnn_block_forward.1} parent=35 // pred_fallthru
        _
      %p1152 = scmp.eq.s32.totalorder %s19, 1
      %p1153 = pnand %p1152, %p234
      %p1154 = pneg %p1153
      // Predicated region
      $region45: #{cnn_block_forward.1} parent=35 // pred_check
        _
      $region46: #{cnn_block_forward.1} parent=35 // pred_check_branch
        %1156 = sbr.rel (%p1153) target = $region48
      $region47: #{cnn_block_forward.1} parent=35 // pred_region
        %v1157 = vld [vmem:[#allocation3] sm:$0x1]
        %v1158 = vmul.f32 %v1157, 0.0025510204
        %v1159 = vld [vmem:[#allocation4] sm:$0x1]
        %v1160 = vmul.f32 %v1159, 0.0025510204
        %v1161 = vmul.f32 %v1158, %v1158
        %v1162 = vsub.f32 %v1160, %v1161
        %v1163 = vmax.f32 %v1162, 0.0
        %v1164 = vadd.f32 %v1163, 1e-05
        %v1165 = vrsqrt.pop %v1164
        %v1166 = vld [vmem:[%s2] sm:$0x1]
        %v1167 = vmul.f32 %v1165, %v1166
        %1168 = vst [vmem:[#allocation5] sm:$0x1] %v1167
        %v1169 = vld [vmem:[%s3] sm:$0x1]
        %v1170 = vmul.f32 %v1158, %v1167
        %v1171 = vsub.f32 %v1169, %v1170
        %1172 = vst [vmem:[#allocation6] sm:$0x1] %v1171
      $region48: #{cnn_block_forward.1} parent=35 // pred_fallthru
        _
      // Predicated region
      $region49: #{cnn_block_forward.1} parent=35 // pred_check
        %p1173 = pneg %p1152
      $region50: #{cnn_block_forward.1} parent=35 // pred_check_branch
        %1175 = sbr.rel (%p1173) target = $region52
      $region51: #{cnn_block_forward.1} parent=35 // pred_region
        %s1176 = smul.u32 %s20, 512
        %s1177 = scalar_lea.vmem [#allocation2], %s1176
        %v1178 = vld [vmem:[%s1177] sm:$0xff]
        %v1179 = vld [vmem:[%s1177 + $0x8] sm:$0xff]
        %v1180 = vld [vmem:[%s1177 + $0x10] sm:$0xff]
        %v1181 = vld [vmem:[%s1177 + $0x18] sm:$0xff]
        %v1182 = vld [vmem:[%s1177 + $0x20] sm:$0xff]
        %v1183 = vld [vmem:[%s1177 + $0x28] sm:$0xff]
        %v1184 = vld [vmem:[%s1177 + $0x30] sm:$0xff]
        %v1185 = vld [vmem:[%s1177 + $0x38] sm:$0xff]
        %v1186 = vld [vmem:[%s1177 + $0x40] sm:$0xff]
        %v1187 = vld [vmem:[%s1177 + $0x48] sm:$0xff]
        %v1188 = vld [vmem:[%s1177 + $0x50] sm:$0xff]
        %v1189 = vld [vmem:[%s1177 + $0x58] sm:$0xff]
        %v1190 = vld [vmem:[%s1177 + $0x60] sm:$0xff]
        %v1191 = vld [vmem:[%s1177 + $0x68] sm:$0xff]
        %v1192 = vld [vmem:[%s1177 + $0x70] sm:$0xff]
        %v1193 = vld [vmem:[%s1177 + $0x78] sm:$0xff]
        %v1194 = vld [vmem:[%s1177 + $0x80] sm:$0xff]
        %v1195 = vld [vmem:[%s1177 + $0x88] sm:$0xff]
        %v1196 = vld [vmem:[%s1177 + $0x90] sm:$0xff]
        %v1197 = vld [vmem:[%s1177 + $0x98] sm:$0xff]
        %v1198 = vld [vmem:[%s1177 + $0xa0] sm:$0xff]
        %v1199 = vld [vmem:[%s1177 + $0xa8] sm:$0xff]
        %v1200 = vld [vmem:[%s1177 + $0xb0] sm:$0xff]
        %v1201 = vld [vmem:[%s1177 + $0xb8] sm:$0xff]
        %v1202 = vld [vmem:[%s1177 + $0xc0] sm:$0xff]
        %v1203 = vld [vmem:[%s1177 + $0xc8] sm:$0xff]
        %v1204 = vld [vmem:[%s1177 + $0xd0] sm:$0xff]
        %v1205 = vld [vmem:[%s1177 + $0xd8] sm:$0xff]
        %v1206 = vld [vmem:[%s1177 + $0xe0] sm:$0xff]
        %v1207 = vld [vmem:[%s1177 + $0xe8] sm:$0xff]
        %v1208 = vld [vmem:[%s1177 + $0xf0] sm:$0xff]
        %v1209 = vld [vmem:[%s1177 + $0xf8] sm:$0xff]
        %v1210 = vld [vmem:[%s1177 + $0x100] sm:$0xff]
        %v1211 = vld [vmem:[%s1177 + $0x108] sm:$0xff]
        %v1212 = vld [vmem:[%s1177 + $0x110] sm:$0xff]
        %v1213 = vld [vmem:[%s1177 + $0x118] sm:$0xff]
        %v1214 = vld [vmem:[%s1177 + $0x120] sm:$0xff]
        %v1215 = vld [vmem:[%s1177 + $0x128] sm:$0xff]
        %v1216 = vld [vmem:[%s1177 + $0x130] sm:$0xff]
        %v1217 = vld [vmem:[%s1177 + $0x138] sm:$0xff]
        %v1218 = vld [vmem:[%s1177 + $0x140] sm:$0xff]
        %v1219 = vld [vmem:[%s1177 + $0x148] sm:$0xff]
        %v1220 = vld [vmem:[%s1177 + $0x150] sm:$0xff]
        %v1221 = vld [vmem:[%s1177 + $0x158] sm:$0xff]
        %v1222 = vld [vmem:[%s1177 + $0x160] sm:$0xff]
        %v1223 = vld [vmem:[%s1177 + $0x168] sm:$0xff]
        %v1224 = vld [vmem:[%s1177 + $0x170] sm:$0xff]
        %v1225 = vld [vmem:[%s1177 + $0x178] sm:$0xff]
        %v1226 = vld [vmem:[%s1177 + $0x180] sm:$0xff]
        %v1227 = vld [vmem:[%s1177 + $0x188] sm:$0xff]
        %v1228 = vld [vmem:[%s1177 + $0x190] sm:$0xff]
        %v1229 = vld [vmem:[%s1177 + $0x198] sm:$0xff]
        %v1230 = vld [vmem:[%s1177 + $0x1a0] sm:$0xff]
        %v1231 = vld [vmem:[%s1177 + $0x1a8] sm:$0xff]
        %v1232 = vld [vmem:[%s1177 + $0x1b0] sm:$0xff]
        %v1233 = vld [vmem:[%s1177 + $0x1b8] sm:$0xff]
        %v1234 = vld [vmem:[%s1177 + $0x1c0] sm:$0xff]
        %v1235 = vld [vmem:[%s1177 + $0x1c8] sm:$0xff]
        %v1236 = vld [vmem:[%s1177 + $0x1d0] sm:$0xff]
        %v1237 = vld [vmem:[%s1177 + $0x1d8] sm:$0xff]
        %v1238 = vld [vmem:[%s1177 + $0x1e0] sm:$0xff]
        %v1239 = vld [vmem:[%s1177 + $0x1e8] sm:$0xff]
        %v1240 = vld [vmem:[%s1177 + $0x1f0] sm:$0xff]
        %v1241 = vld [vmem:[%s1177 + $0x1f8] sm:$0xff]
        %v1242 = vld [vmem:[#allocation5] sm:$0x1]
        %v1244 = vlaneseq
        %v1245 = vshrl.u32 %v1244, 7
        %v1246 = vsub.s32 0, %v1245
        %v1247 = vrot.slane %v1242, %v1246
        %v1249 = vmul.f32 %v1178, %v1247
        %v1250 = vmul.f32 %v1179, %v1247
        %v1251 = vmul.f32 %v1180, %v1247
        %v1252 = vmul.f32 %v1181, %v1247
        %v1253 = vmul.f32 %v1182, %v1247
        %v1254 = vmul.f32 %v1183, %v1247
        %v1255 = vmul.f32 %v1184, %v1247
        %v1256 = vmul.f32 %v1185, %v1247
        %v1257 = vmul.f32 %v1186, %v1247
        %v1258 = vmul.f32 %v1187, %v1247
        %v1259 = vmul.f32 %v1188, %v1247
        %v1260 = vmul.f32 %v1189, %v1247
        %v1261 = vmul.f32 %v1190, %v1247
        %v1262 = vmul.f32 %v1191, %v1247
        %v1263 = vmul.f32 %v1192, %v1247
        %v1264 = vmul.f32 %v1193, %v1247
        %v1265 = vmul.f32 %v1194, %v1247
        %v1266 = vmul.f32 %v1195, %v1247
        %v1267 = vmul.f32 %v1196, %v1247
        %v1268 = vmul.f32 %v1197, %v1247
        %v1269 = vmul.f32 %v1198, %v1247
        %v1270 = vmul.f32 %v1199, %v1247
        %v1271 = vmul.f32 %v1200, %v1247
        %v1272 = vmul.f32 %v1201, %v1247
        %v1273 = vmul.f32 %v1202, %v1247
        %v1274 = vmul.f32 %v1203, %v1247
        %v1275 = vmul.f32 %v1204, %v1247
        %v1276 = vmul.f32 %v1205, %v1247
        %v1277 = vmul.f32 %v1206, %v1247
        %v1278 = vmul.f32 %v1207, %v1247
        %v1279 = vmul.f32 %v1208, %v1247
        %v1280 = vmul.f32 %v1209, %v1247
        %v1281 = vmul.f32 %v1210, %v1247
        %v1282 = vmul.f32 %v1211, %v1247
        %v1283 = vmul.f32 %v1212, %v1247
        %v1284 = vmul.f32 %v1213, %v1247
        %v1285 = vmul.f32 %v1214, %v1247
        %v1286 = vmul.f32 %v1215, %v1247
        %v1287 = vmul.f32 %v1216, %v1247
        %v1288 = vmul.f32 %v1217, %v1247
        %v1289 = vmul.f32 %v1218, %v1247
        %v1290 = vmul.f32 %v1219, %v1247
        %v1291 = vmul.f32 %v1220, %v1247
        %v1292 = vmul.f32 %v1221, %v1247
        %v1293 = vmul.f32 %v1222, %v1247
        %v1294 = vmul.f32 %v1223, %v1247
        %v1295 = vmul.f32 %v1224, %v1247
        %v1296 = vmul.f32 %v1225, %v1247
        %v1297 = vmul.f32 %v1226, %v1247
        %v1298 = vmul.f32 %v1227, %v1247
        %v1299 = vmul.f32 %v1228, %v1247
        %v1300 = vmul.f32 %v1229, %v1247
        %v1301 = vmul.f32 %v1230, %v1247
        %v1302 = vmul.f32 %v1231, %v1247
        %v1303 = vmul.f32 %v1232, %v1247
        %v1304 = vmul.f32 %v1233, %v1247
        %v1305 = vmul.f32 %v1234, %v1247
        %v1306 = vmul.f32 %v1235, %v1247
        %v1307 = vmul.f32 %v1236, %v1247
        %v1308 = vmul.f32 %v1237, %v1247
        %v1309 = vmul.f32 %v1238, %v1247
        %v1310 = vmul.f32 %v1239, %v1247
        %v1311 = vmul.f32 %v1240, %v1247
        %v1312 = vmul.f32 %v1241, %v1247
        %v1313 = vld [vmem:[#allocation6] sm:$0x1]
        %v1315 = vlaneseq
        %v1316 = vshrl.u32 %v1315, 7
        %v1317 = vsub.s32 0, %v1316
        %v1318 = vrot.slane %v1313, %v1317
        %v1320 = vadd.f32 %v1249, %v1318
        %v1321 = vadd.f32 %v1250, %v1318
        %v1322 = vadd.f32 %v1251, %v1318
        %v1323 = vadd.f32 %v1252, %v1318
        %v1324 = vadd.f32 %v1253, %v1318
        %v1325 = vadd.f32 %v1254, %v1318
        %v1326 = vadd.f32 %v1255, %v1318
        %v1327 = vadd.f32 %v1256, %v1318
        %v1328 = vadd.f32 %v1257, %v1318
        %v1329 = vadd.f32 %v1258, %v1318
        %v1330 = vadd.f32 %v1259, %v1318
        %v1331 = vadd.f32 %v1260, %v1318
        %v1332 = vadd.f32 %v1261, %v1318
        %v1333 = vadd.f32 %v1262, %v1318
        %v1334 = vadd.f32 %v1263, %v1318
        %v1335 = vadd.f32 %v1264, %v1318
        %v1336 = vadd.f32 %v1265, %v1318
        %v1337 = vadd.f32 %v1266, %v1318
        %v1338 = vadd.f32 %v1267, %v1318
        %v1339 = vadd.f32 %v1268, %v1318
        %v1340 = vadd.f32 %v1269, %v1318
        %v1341 = vadd.f32 %v1270, %v1318
        %v1342 = vadd.f32 %v1271, %v1318
        %v1343 = vadd.f32 %v1272, %v1318
        %v1344 = vadd.f32 %v1273, %v1318
        %v1345 = vadd.f32 %v1274, %v1318
        %v1346 = vadd.f32 %v1275, %v1318
        %v1347 = vadd.f32 %v1276, %v1318
        %v1348 = vadd.f32 %v1277, %v1318
        %v1349 = vadd.f32 %v1278, %v1318
        %v1350 = vadd.f32 %v1279, %v1318
        %v1351 = vadd.f32 %v1280, %v1318
        %v1352 = vadd.f32 %v1281, %v1318
        %v1353 = vadd.f32 %v1282, %v1318
        %v1354 = vadd.f32 %v1283, %v1318
        %v1355 = vadd.f32 %v1284, %v1318
        %v1356 = vadd.f32 %v1285, %v1318
        %v1357 = vadd.f32 %v1286, %v1318
        %v1358 = vadd.f32 %v1287, %v1318
        %v1359 = vadd.f32 %v1288, %v1318
        %v1360 = vadd.f32 %v1289, %v1318
        %v1361 = vadd.f32 %v1290, %v1318
        %v1362 = vadd.f32 %v1291, %v1318
        %v1363 = vadd.f32 %v1292, %v1318
        %v1364 = vadd.f32 %v1293, %v1318
        %v1365 = vadd.f32 %v1294, %v1318
        %v1366 = vadd.f32 %v1295, %v1318
        %v1367 = vadd.f32 %v1296, %v1318
        %v1368 = vadd.f32 %v1297, %v1318
        %v1369 = vadd.f32 %v1298, %v1318
        %v1370 = vadd.f32 %v1299, %v1318
        %v1371 = vadd.f32 %v1300, %v1318
        %v1372 = vadd.f32 %v1301, %v1318
        %v1373 = vadd.f32 %v1302, %v1318
        %v1374 = vadd.f32 %v1303, %v1318
        %v1375 = vadd.f32 %v1304, %v1318
        %v1376 = vadd.f32 %v1305, %v1318
        %v1377 = vadd.f32 %v1306, %v1318
        %v1378 = vadd.f32 %v1307, %v1318
        %v1379 = vadd.f32 %v1308, %v1318
        %v1380 = vadd.f32 %v1309, %v1318
        %v1381 = vadd.f32 %v1310, %v1318
        %v1382 = vadd.f32 %v1311, %v1318
        %v1383 = vadd.f32 %v1312, %v1318
        %v1384 = vmax.f32 %v1320, 0.0
        %v1385 = vmax.f32 %v1321, 0.0
        %v1386 = vmax.f32 %v1322, 0.0
        %v1387 = vmax.f32 %v1323, 0.0
        %v1388 = vmax.f32 %v1324, 0.0
        %v1389 = vmax.f32 %v1325, 0.0
        %v1390 = vmax.f32 %v1326, 0.0
        %v1391 = vmax.f32 %v1327, 0.0
        %v1392 = vmax.f32 %v1328, 0.0
        %v1393 = vmax.f32 %v1329, 0.0
        %v1394 = vmax.f32 %v1330, 0.0
        %v1395 = vmax.f32 %v1331, 0.0
        %v1396 = vmax.f32 %v1332, 0.0
        %v1397 = vmax.f32 %v1333, 0.0
        %v1398 = vmax.f32 %v1334, 0.0
        %v1399 = vmax.f32 %v1335, 0.0
        %v1400 = vmax.f32 %v1336, 0.0
        %v1401 = vmax.f32 %v1337, 0.0
        %v1402 = vmax.f32 %v1338, 0.0
        %v1403 = vmax.f32 %v1339, 0.0
        %v1404 = vmax.f32 %v1340, 0.0
        %v1405 = vmax.f32 %v1341, 0.0
        %v1406 = vmax.f32 %v1342, 0.0
        %v1407 = vmax.f32 %v1343, 0.0
        %v1408 = vmax.f32 %v1344, 0.0
        %v1409 = vmax.f32 %v1345, 0.0
        %v1410 = vmax.f32 %v1346, 0.0
        %v1411 = vmax.f32 %v1347, 0.0
        %v1412 = vmax.f32 %v1348, 0.0
        %v1413 = vmax.f32 %v1349, 0.0
        %v1414 = vmax.f32 %v1350, 0.0
        %v1415 = vmax.f32 %v1351, 0.0
        %v1416 = vmax.f32 %v1352, 0.0
        %v1417 = vmax.f32 %v1353, 0.0
        %v1418 = vmax.f32 %v1354, 0.0
        %v1419 = vmax.f32 %v1355, 0.0
        %v1420 = vmax.f32 %v1356, 0.0
        %v1421 = vmax.f32 %v1357, 0.0
        %v1422 = vmax.f32 %v1358, 0.0
        %v1423 = vmax.f32 %v1359, 0.0
        %v1424 = vmax.f32 %v1360, 0.0
        %v1425 = vmax.f32 %v1361, 0.0
        %v1426 = vmax.f32 %v1362, 0.0
        %v1427 = vmax.f32 %v1363, 0.0
        %v1428 = vmax.f32 %v1364, 0.0
        %v1429 = vmax.f32 %v1365, 0.0
        %v1430 = vmax.f32 %v1366, 0.0
        %v1431 = vmax.f32 %v1367, 0.0
        %v1432 = vmax.f32 %v1368, 0.0
        %v1433 = vmax.f32 %v1369, 0.0
        %v1434 = vmax.f32 %v1370, 0.0
        %v1435 = vmax.f32 %v1371, 0.0
        %v1436 = vmax.f32 %v1372, 0.0
        %v1437 = vmax.f32 %v1373, 0.0
        %v1438 = vmax.f32 %v1374, 0.0
        %v1439 = vmax.f32 %v1375, 0.0
        %v1440 = vmax.f32 %v1376, 0.0
        %v1441 = vmax.f32 %v1377, 0.0
        %v1442 = vmax.f32 %v1378, 0.0
        %v1443 = vmax.f32 %v1379, 0.0
        %v1444 = vmax.f32 %v1380, 0.0
        %v1445 = vmax.f32 %v1381, 0.0
        %v1446 = vmax.f32 %v1382, 0.0
        %v1447 = vmax.f32 %v1383, 0.0
        %1448 = vst [vmem:[%s229] sm:$0xff] %v1384
        %1449 = vst [vmem:[%s229 + $0x8] sm:$0xff] %v1385
        %1450 = vst [vmem:[%s229 + $0x10] sm:$0xff] %v1386
        %1451 = vst [vmem:[%s229 + $0x18] sm:$0xff] %v1387
        %1452 = vst [vmem:[%s229 + $0x20] sm:$0xff] %v1388
        %1453 = vst [vmem:[%s229 + $0x28] sm:$0xff] %v1389
        %1454 = vst [vmem:[%s229 + $0x30] sm:$0xff] %v1390
        %1455 = vst [vmem:[%s229 + $0x38] sm:$0xff] %v1391
        %1456 = vst [vmem:[%s229 + $0x40] sm:$0xff] %v1392
        %1457 = vst [vmem:[%s229 + $0x48] sm:$0xff] %v1393
        %1458 = vst [vmem:[%s229 + $0x50] sm:$0xff] %v1394
        %1459 = vst [vmem:[%s229 + $0x58] sm:$0xff] %v1395
        %1460 = vst [vmem:[%s229 + $0x60] sm:$0xff] %v1396
        %1461 = vst [vmem:[%s229 + $0x68] sm:$0xff] %v1397
        %1462 = vst [vmem:[%s229 + $0x70] sm:$0xff] %v1398
        %1463 = vst [vmem:[%s229 + $0x78] sm:$0xff] %v1399
        %1464 = vst [vmem:[%s229 + $0x80] sm:$0xff] %v1400
        %1465 = vst [vmem:[%s229 + $0x88] sm:$0xff] %v1401
        %1466 = vst [vmem:[%s229 + $0x90] sm:$0xff] %v1402
        %1467 = vst [vmem:[%s229 + $0x98] sm:$0xff] %v1403
        %1468 = vst [vmem:[%s229 + $0xa0] sm:$0xff] %v1404
        %1469 = vst [vmem:[%s229 + $0xa8] sm:$0xff] %v1405
        %1470 = vst [vmem:[%s229 + $0xb0] sm:$0xff] %v1406
        %1471 = vst [vmem:[%s229 + $0xb8] sm:$0xff] %v1407
        %1472 = vst [vmem:[%s229 + $0xc0] sm:$0xff] %v1408
        %1473 = vst [vmem:[%s229 + $0xc8] sm:$0xff] %v1409
        %1474 = vst [vmem:[%s229 + $0xd0] sm:$0xff] %v1410
        %1475 = vst [vmem:[%s229 + $0xd8] sm:$0xff] %v1411
        %1476 = vst [vmem:[%s229 + $0xe0] sm:$0xff] %v1412
        %1477 = vst [vmem:[%s229 + $0xe8] sm:$0xff] %v1413
        %1478 = vst [vmem:[%s229 + $0xf0] sm:$0xff] %v1414
        %1479 = vst [vmem:[%s229 + $0xf8] sm:$0xff] %v1415
        %1480 = vst [vmem:[%s229 + $0x100] sm:$0xff] %v1416
        %1481 = vst [vmem:[%s229 + $0x108] sm:$0xff] %v1417
        %1482 = vst [vmem:[%s229 + $0x110] sm:$0xff] %v1418
        %1483 = vst [vmem:[%s229 + $0x118] sm:$0xff] %v1419
        %1484 = vst [vmem:[%s229 + $0x120] sm:$0xff] %v1420
        %1485 = vst [vmem:[%s229 + $0x128] sm:$0xff] %v1421
        %1486 = vst [vmem:[%s229 + $0x130] sm:$0xff] %v1422
        %1487 = vst [vmem:[%s229 + $0x138] sm:$0xff] %v1423
        %1488 = vst [vmem:[%s229 + $0x140] sm:$0xff] %v1424
        %1489 = vst [vmem:[%s229 + $0x148] sm:$0xff] %v1425
        %1490 = vst [vmem:[%s229 + $0x150] sm:$0xff] %v1426
        %1491 = vst [vmem:[%s229 + $0x158] sm:$0xff] %v1427
        %1492 = vst [vmem:[%s229 + $0x160] sm:$0xff] %v1428
        %1493 = vst [vmem:[%s229 + $0x168] sm:$0xff] %v1429
        %1494 = vst [vmem:[%s229 + $0x170] sm:$0xff] %v1430
        %1495 = vst [vmem:[%s229 + $0x178] sm:$0xff] %v1431
        %1496 = vst [vmem:[%s229 + $0x180] sm:$0xff] %v1432
        %1497 = vst [vmem:[%s229 + $0x188] sm:$0xff] %v1433
        %1498 = vst [vmem:[%s229 + $0x190] sm:$0xff] %v1434
        %1499 = vst [vmem:[%s229 + $0x198] sm:$0xff] %v1435
        %1500 = vst [vmem:[%s229 + $0x1a0] sm:$0xff] %v1436
        %1501 = vst [vmem:[%s229 + $0x1a8] sm:$0xff] %v1437
        %1502 = vst [vmem:[%s229 + $0x1b0] sm:$0xff] %v1438
        %1503 = vst [vmem:[%s229 + $0x1b8] sm:$0xff] %v1439
        %1504 = vst [vmem:[%s229 + $0x1c0] sm:$0xff] %v1440
        %1505 = vst [vmem:[%s229 + $0x1c8] sm:$0xff] %v1441
        %1506 = vst [vmem:[%s229 + $0x1d0] sm:$0xff] %v1442
        %1507 = vst [vmem:[%s229 + $0x1d8] sm:$0xff] %v1443
        %1508 = vst [vmem:[%s229 + $0x1e0] sm:$0xff] %v1444
        %1509 = vst [vmem:[%s229 + $0x1e8] sm:$0xff] %v1445
        %1510 = vst [vmem:[%s229 + $0x1f0] sm:$0xff] %v1446
        %1511 = vst [vmem:[%s229 + $0x1f8] sm:$0xff] %v1447
      $region52: #{cnn_block_forward.1} parent=35 // pred_fallthru
        _
      %s1512 = smul.u32 %s19, %s20
      %s1513 = smul.u32 64, %s1512
      %p1514 = scmp.lt.s32.totalorder %s1513, 63
      %s1515 = scalar_select %p1514, %s1513, 63
      %s1516 = smul.addr %s1515, 8
      %s1517 = scalar_lea.vmem %s4, %s1516
      // Predicated region
      $region53: #{cnn_block_forward.1} parent=35 // pred_check
        %p1518 = pneg %p140
      $region54: #{cnn_block_forward.1} parent=35 // pred_check_branch
        %1520 = sbr.rel (%p1518) target = $region56
      $region55: #{cnn_block_forward.1} parent=35 // pred_region
        %s1521 = smul.u32 %s19, %s20
        %s1522 = smul.u32 64, %s1521
      $region56: #{cnn_block_forward.1} parent=35 // pred_fallthru
        _
    $region36: #{cnn_block_forward.1} parent=5 // pred_fallthru
      _
    %p1523 = scmp.le.s32.totalorder 2, %s10
    // Predicated region
    $region57: #{cnn_block_forward.1} parent=5 // pred_check
      %p1524 = pneg %p1523
    $region58: #{cnn_block_forward.1} parent=5 // pred_check_branch
      %1526 = sbr.rel (%p1524) target = $region60
    $region59: #{cnn_block_forward.1} parent=5 // pred_region
      %s1527 = ssub.s32 %s10, 2
      // Predicated region
      $region61: #{cnn_block_forward.1} parent=59 // pred_check
        %p1528 = pneg %p146
      $region62: #{cnn_block_forward.1} parent=59 // pred_check_branch
        %1530 = sbr.rel (%p1528) target = $region64
      $region63: #{cnn_block_forward.1} parent=59 // pred_region
        %s1531 = smul.u32 %s21, %s22
        %s1532 = smul.u32 64, %s1531
        %p1533 = scmp.lt.s32.totalorder %s1532, 63
        %s1534 = scalar_select %p1533, %s1532, 63
        %s1535 = smul.addr %s1534, 8
        %s1536 = scalar_lea.vmem %s4, %s1535
      $region64: #{cnn_block_forward.1} parent=59 // pred_fallthru
        _
    $region60: #{cnn_block_forward.1} parent=5 // pred_fallthru
      _
  $region6: #{cnn_block_forward.1} parent=0 // loop_footer
    %s14 = sadd.s32 1, %s10
  $region7: #{cnn_block_forward.1} parent=0 // loop_footer_branch
    %9 = sbr.rel target = $region3
  $region8: #{cnn_block_forward.1} parent=0 // loop_exit
    _

</llo_original>
